<compile_context>
chip_gen: v6e
topology: v6e:2x2x1
jax: 0.10.0
libtpu: 0.0.40
codegen_flags: <defaults>
</compile_context>

<pallas_src>
import functools
import math

import jax
import jax.numpy as jnp
from jax.experimental import pallas as pl
from jax.experimental.pallas import tpu as pltpu


def mha_kernel(q_ref, k_ref, v_ref, wqkv_ref, bqkv_ref, wo_ref, bo_ref,
               o_ref, ctx_scratch, *, h, d_k, bt, s):
    rows = bt * s
    D = h * d_k
    cdt = q_ref.dtype  # compute dtype (activations/weights pre-cast by wrapper)

    def project(x_ref, idx):
        # (rows, D) @ (D, D) full-width projection, f32 accumulation on the MXU.
        x = x_ref[...].reshape(rows, D)
        y = jnp.dot(x, wqkv_ref[idx], preferred_element_type=jnp.float32)
        y = y + bqkv_ref[idx]                     # (1, D) f32 bias broadcast
        return y.astype(cdt)                      # cast once before head slicing

    q_all = project(q_ref, 0)   # 1/sqrt(d_k) already folded into wq/bq
    k_all = project(k_ref, 1)
    v_all = project(v_ref, 2)

    # Per-head scaled-dot-product attention; contexts are written head-by-head
    # into a lane-dense (rows, D) scratch so the output projection below is a
    # single contraction of depth D (not h shallow depth-d_k matmuls + sum).
    for i in range(h):
        sl = slice(i * d_k, (i + 1) * d_k)
        qh = q_all[:, sl].reshape(bt, s, d_k)
        kh = k_all[:, sl].reshape(bt, s, d_k)
        vh = v_all[:, sl].reshape(bt, s, d_k)

        scores = jnp.einsum("bqd,bkd->bqk", qh, kh,
                            preferred_element_type=jnp.float32)   # (bt, s, s)
        row_max = jnp.max(scores, axis=-1, keepdims=True)
        p_un = jnp.exp(scores - row_max)
        row_sum = jnp.sum(p_un, axis=-1, keepdims=True)            # f32
        ctx = jnp.einsum("bqk,bkd->bqd", p_un.astype(cdt), vh,
                         preferred_element_type=jnp.float32)       # (bt, s, d_k)
        # Deferred softmax normalization on the small (bt, s, d_k) context;
        # exact reciprocal (EUP slot is idle relative to the MXU).
        ctx = ctx * pl.reciprocal(row_sum, approx=False)
        ctx_scratch[:, i * d_k:(i + 1) * d_k] = ctx.reshape(rows, d_k).astype(cdt)

    # Output projection: one full-depth matmul over the merged heads.
    ctx_cat = ctx_scratch[...]                                     # (rows, D)
    out = jnp.dot(ctx_cat, wo_ref[...], preferred_element_type=jnp.float32)
    out = out + bo_ref[...]
    o_ref[...] = out.reshape(bt, s, D).astype(o_ref.dtype)


def _pick_batch_tile(B, S, row_target=512):
    """Batch elements per grid step.

    Targets ~row_target matmul rows per step (MXU/pipeline efficiency) while
    keeping at least 2 grid steps when B >= 2 so both v7x TensorCores get work.
    """
    best = 1
    for c in range(1, B + 1):
        if B % c:
            continue
        if c * S <= row_target and (B // c >= 2 or B == 1):
            best = c
    # TODO(synk): tile the query axis (S) as well when B == 1 or S is huge.
    return best


def multi_headed_attention(q, k, v, params, *, h, compute_dtype=None):
    """params = (wq, bq, wk, bk, wv, bv, wo, bo) with W:(D,D), b:(1,D); y = x@W + b.

    compute_dtype=jnp.bfloat16 feeds the MXU bf16 operands (f32 accumulation).
    """
    wq, bq, wk, bk, wv, bv, wo, bo = params
    B, S, D = q.shape
    assert D % h == 0
    d_k = D // h
    out_dtype = q.dtype
    cdt = jnp.dtype(compute_dtype) if compute_dtype is not None else jnp.dtype(q.dtype)

    bt = _pick_batch_tile(B, S)
    n_blocks = B // bt
    rows = bt * S

    # One-time wrapper-side (XLA) prep: fold 1/sqrt(d_k) into wq/bq, stack the
    # small weight/bias tensors, cast operands to the compute dtype. Biases
    # stay f32 (added to the f32 accumulator inside the kernel).
    scale = 1.0 / math.sqrt(d_k)
    wqkv = jnp.stack([wq * scale, wk, wv], axis=0).astype(cdt)           # (3, D, D)
    bqkv = jnp.stack([bq.reshape(1, D) * scale,
                      bk.reshape(1, D),
                      bv.reshape(1, D)], axis=0).astype(jnp.float32)     # (3, 1, D)
    wo_c = wo.astype(cdt)                                                # (D, D)
    bo2 = bo.reshape(1, D).astype(jnp.float32)                           # (1, D)

    qc = q.astype(cdt)
    kc = k.astype(cdt)
    vc = v.astype(cdt)

    kernel = functools.partial(mha_kernel, h=h, d_k=d_k, bt=bt, s=S)

    itemsize = jnp.dtype(cdt).itemsize
    out_itemsize = jnp.dtype(out_dtype).itemsize
    blk_act = rows * D * itemsize
    w_blocks = 4 * D * D * itemsize + 4 * D * 4
    f32_temps = 4 * (3 * rows * D          # q/k/v projections
                     + 4 * bt * S * S      # a few heads' scores / p_un live at once
                     + 2 * rows * D)       # ctx / output-projection accumulators
    est = (2 * 3 * blk_act                 # double-buffered q/k/v blocks
           + 2 * rows * D * out_itemsize   # double-buffered output block
           + 2 * w_blocks                  # (default double-buffered) weights
           + blk_act                       # ctx scratch
           + f32_temps)
    # Cap at 48 MiB: leaves headroom inside v7x's 64 MiB physical VMEM while
    # staying well above the default scoped limit on v5e/v6e.
    vmem_limit = int(min(48 * 2**20, max(32 * 2**20, 2 * est)))

    flops = 8 * B * S * D * D + 4 * B * S * S * D
    transcendentals = B * h * S * S + B * h * S
    bytes_accessed = 4 * B * S * D * itemsize + w_blocks

    out = pl.pallas_call(
        kernel,
        out_shape=jax.ShapeDtypeStruct((B, S, D), out_dtype),
        grid=(n_blocks,),
        in_specs=[
            pl.BlockSpec((bt, S, D), lambda i: (i, 0, 0)),     # q
            pl.BlockSpec((bt, S, D), lambda i: (i, 0, 0)),     # k
            pl.BlockSpec((bt, S, D), lambda i: (i, 0, 0)),     # v
            pl.BlockSpec((3, D, D), lambda i: (0, 0, 0)),      # stacked wq/wk/wv
            pl.BlockSpec((3, 1, D), lambda i: (0, 0, 0)),      # stacked bq/bk/bv (f32)
            pl.BlockSpec((D, D), lambda i: (0, 0)),            # wo
            pl.BlockSpec((1, D), lambda i: (0, 0)),            # bo (f32)
        ],
        out_specs=pl.BlockSpec((bt, S, D), lambda i: (i, 0, 0)),
        scratch_shapes=[pltpu.VMEM((rows, D), cdt)],           # merged-head context
        compiler_params=pltpu.CompilerParams(
            dimension_semantics=("parallel",),
            vmem_limit_bytes=vmem_limit),
        cost_estimate=pl.CostEstimate(
            flops=flops,
            transcendentals=transcendentals,
            bytes_accessed=bytes_accessed),
    )(qc, kc, vc, wqkv, bqkv, wo_c, bo2)
    return out


def reference_mha(q, k, v, params, *, h):
    """Pure-JAX reference mirroring the PyTorch forward (eval mode, mask=None)."""
    wq, bq, wk, bk, wv, bv, wo, bo = params
    B, S, D = q.shape
    d_k = D // h

    def proj(x, w, b):
        y = x @ w + b                                          # (B, S, D)
        return y.reshape(B, S, h, d_k).transpose(0, 2, 1, 3)   # (B, h, S, d_k)

    qh, kh, vh = proj(q, wq, bq), proj(k, wk, bk), proj(v, wv, bv)
    scores = jnp.einsum("bhqd,bhkd->bhqk", qh, kh) / math.sqrt(d_k)
    p = jax.nn.softmax(scores, axis=-1)
    ctx = jnp.einsum("bhqk,bhkd->bhqd", p, vh)
    ctx = ctx.transpose(0, 2, 1, 3).reshape(B, S, D)
    return ctx @ wo + bo


if __name__ == "__main__":
    root = jax.random.PRNGKey(0)

    # (B, S, D, H): small primary config plus one that exercises a multi-step grid.
    configs = [(2, 8, 32, 4), (4, 128, 64, 4)]

    for cfg_idx, (B, S, D, H) in enumerate(configs):
        key = jax.random.fold_in(root, cfg_idx)
        keys = jax.random.split(key, 11)
        bound = 1.0 / math.sqrt(D)

        def make_linear(kw, kb):
            w = jax.random.uniform(kw, (D, D), jnp.float32, -bound, bound)
            b = jax.random.uniform(kb, (1, D), jnp.float32, -bound, bound)
            return w, b

        wq, bq = make_linear(keys[0], keys[1])
        wk, bk = make_linear(keys[2], keys[3])
        wv, bv = make_linear(keys[4], keys[5])
        wo, bo = make_linear(keys[6], keys[7])
        params = (wq, bq, wk, bk, wv, bv, wo, bo)

        q = jax.random.normal(keys[8], (B, S, D), jnp.float32)
        k = jax.random.normal(keys[9], (B, S, D), jnp.float32)
        v = jax.random.normal(keys[10], (B, S, D), jnp.float32)

        # High-precision f32 reference (so the f32 kernel check is tight).
        with jax.default_matmul_precision("highest"):
            ref = reference_mha(q, k, v, params, h=H)
        ref = jax.block_until_ready(ref)

        # f32 operand path: tight tolerance (exact reciprocal, f32 accumulation).
        out_f32 = jax.block_until_ready(multi_headed_attention(q, k, v, params, h=H))
        assert out_f32.shape == (B, S, D)
        assert jnp.allclose(out_f32, ref, atol=5e-3, rtol=5e-3), (
            f"f32 Pallas kernel mismatch vs reference for config {(B, S, D, H)}")

        # bf16 operand path (perf mode): tolerance reflects bf16 operand
        # rounding (~2^-9 relative per matmul chain), not kernel structure.
        out_bf16 = jax.block_until_ready(
            multi_headed_attention(q, k, v, params, h=H,
                                   compute_dtype=jnp.bfloat16))
        assert jnp.allclose(out_bf16.astype(jnp.float32), ref,
                            atol=3e-2, rtol=3e-2), (
            f"bf16 Pallas kernel mismatch vs reference for config {(B, S, D, H)}")

    print("KERNEL_OK")
</pallas_src>

<mosaic_0001>
module attributes {stable_mosaic.version = 11 : i64} {
  func.func @mha_kernel(%arg0: i32, %arg1: memref<1x8x32xf32, #tpu.memory_space<vmem>>, %arg2: memref<1x8x32xf32, #tpu.memory_space<vmem>>, %arg3: memref<1x8x32xf32, #tpu.memory_space<vmem>>, %arg4: memref<3x32x32xf32, #tpu.memory_space<vmem>>, %arg5: memref<3x1x32xf32, #tpu.memory_space<vmem>>, %arg6: memref<32x32xf32, #tpu.memory_space<vmem>>, %arg7: memref<1x32xf32, #tpu.memory_space<vmem>>, %arg8: memref<1x8x32xf32, #tpu.memory_space<vmem>>, %arg9: memref<8x32xf32, #tpu.memory_space<vmem>>) attributes {dimension_semantics = [#tpu.dimension_semantics<parallel>], iteration_bounds = array<i64: 2>, scalar_prefetch = 0 : i64, scratch_operands = 1 : i64, tpu.core_type = #tpu.core_type<tc>, window_params = [{transform_indices = @transform_0, window_bounds = array<i64: 1, 8, 32>}, {transform_indices = @transform_1, window_bounds = array<i64: 1, 8, 32>}, {transform_indices = @transform_2, window_bounds = array<i64: 1, 8, 32>}, {pipeline_mode = #tpu.pipeline_mode<synchronous>, transform_indices = @transform_3, window_bounds = array<i64: 3, 32, 32>}, {pipeline_mode = #tpu.pipeline_mode<synchronous>, transform_indices = @transform_4, window_bounds = array<i64: 3, 1, 32>}, {pipeline_mode = #tpu.pipeline_mode<synchronous>, transform_indices = @transform_5, window_bounds = array<i64: 32, 32>}, {pipeline_mode = #tpu.pipeline_mode<synchronous>, transform_indices = @transform_6, window_bounds = array<i64: 1, 32>}, {transform_indices = @transform_7, window_bounds = array<i64: 1, 8, 32>}]} {
    %c0 = arith.constant 0 : index
    %c0_0 = arith.constant 0 : index
    %c0_1 = arith.constant 0 : index
    %0 = vector.load %arg1[%c0, %c0_0, %c0_1] : memref<1x8x32xf32, #tpu.memory_space<vmem>>, vector<1x8x32xf32>
    %1 = vector.shape_cast %0 : vector<1x8x32xf32> to vector<8x32xf32>
    %c0_2 = arith.constant 0 : index
    %c0_3 = arith.constant 0 : index
    %c0_4 = arith.constant 0 : index
    %2 = vector.load %arg4[%c0_2, %c0_3, %c0_4] : memref<3x32x32xf32, #tpu.memory_space<vmem>>, vector<1x32x32xf32>
    %3 = vector.shape_cast %2 : vector<1x32x32xf32> to vector<32x32xf32>
    %cst = arith.constant dense<0.000000e+00> : vector<8x32xf32>
    %4 = tpu.matmul %1, %3, %cst {dimension_numbers = #tpu.dot_dimension_numbers<[1], [0], [0], [1], [0, 0, 1, 1], [], []>} : vector<8x32xf32>, vector<32x32xf32>, vector<8x32xf32> -> vector<8x32xf32>
    %c0_5 = arith.constant 0 : index
    %c0_6 = arith.constant 0 : index
    %c0_7 = arith.constant 0 : index
    %5 = vector.load %arg5[%c0_5, %c0_6, %c0_7] : memref<3x1x32xf32, #tpu.memory_space<vmem>>, vector<1x1x32xf32>
    %6 = vector.shape_cast %5 : vector<1x1x32xf32> to vector<1x32xf32>
    %7 = vector.broadcast %6 : vector<1x32xf32> to vector<8x32xf32>
    %8 = arith.addf %4, %7 : vector<8x32xf32>
    %c0_8 = arith.constant 0 : index
    %c0_9 = arith.constant 0 : index
    %c0_10 = arith.constant 0 : index
    %9 = vector.load %arg2[%c0_8, %c0_9, %c0_10] : memref<1x8x32xf32, #tpu.memory_space<vmem>>, vector<1x8x32xf32>
    %10 = vector.shape_cast %9 : vector<1x8x32xf32> to vector<8x32xf32>
    %c1 = arith.constant 1 : index
    %c0_11 = arith.constant 0 : index
    %c0_12 = arith.constant 0 : index
    %11 = vector.load %arg4[%c1, %c0_11, %c0_12] : memref<3x32x32xf32, #tpu.memory_space<vmem>>, vector<1x32x32xf32>
    %12 = vector.shape_cast %11 : vector<1x32x32xf32> to vector<32x32xf32>
    %cst_13 = arith.constant dense<0.000000e+00> : vector<8x32xf32>
    %13 = tpu.matmul %10, %12, %cst_13 {dimension_numbers = #tpu.dot_dimension_numbers<[1], [0], [0], [1], [0, 0, 1, 1], [], []>} : vector<8x32xf32>, vector<32x32xf32>, vector<8x32xf32> -> vector<8x32xf32>
    %c1_14 = arith.constant 1 : index
    %c0_15 = arith.constant 0 : index
    %c0_16 = arith.constant 0 : index
    %14 = vector.load %arg5[%c1_14, %c0_15, %c0_16] : memref<3x1x32xf32, #tpu.memory_space<vmem>>, vector<1x1x32xf32>
    %15 = vector.shape_cast %14 : vector<1x1x32xf32> to vector<1x32xf32>
    %16 = vector.broadcast %15 : vector<1x32xf32> to vector<8x32xf32>
    %17 = arith.addf %13, %16 : vector<8x32xf32>
    %c0_17 = arith.constant 0 : index
    %c0_18 = arith.constant 0 : index
    %c0_19 = arith.constant 0 : index
    %18 = vector.load %arg3[%c0_17, %c0_18, %c0_19] : memref<1x8x32xf32, #tpu.memory_space<vmem>>, vector<1x8x32xf32>
    %19 = vector.shape_cast %18 : vector<1x8x32xf32> to vector<8x32xf32>
    %c2 = arith.constant 2 : index
    %c0_20 = arith.constant 0 : index
    %c0_21 = arith.constant 0 : index
    %20 = vector.load %arg4[%c2, %c0_20, %c0_21] : memref<3x32x32xf32, #tpu.memory_space<vmem>>, vector<1x32x32xf32>
    %21 = vector.shape_cast %20 : vector<1x32x32xf32> to vector<32x32xf32>
    %cst_22 = arith.constant dense<0.000000e+00> : vector<8x32xf32>
    %22 = tpu.matmul %19, %21, %cst_22 {dimension_numbers = #tpu.dot_dimension_numbers<[1], [0], [0], [1], [0, 0, 1, 1], [], []>} : vector<8x32xf32>, vector<32x32xf32>, vector<8x32xf32> -> vector<8x32xf32>
    %c2_23 = arith.constant 2 : index
    %c0_24 = arith.constant 0 : index
    %c0_25 = arith.constant 0 : index
    %23 = vector.load %arg5[%c2_23, %c0_24, %c0_25] : memref<3x1x32xf32, #tpu.memory_space<vmem>>, vector<1x1x32xf32>
    %24 = vector.shape_cast %23 : vector<1x1x32xf32> to vector<1x32xf32>
    %25 = vector.broadcast %24 : vector<1x32xf32> to vector<8x32xf32>
    %26 = arith.addf %22, %25 : vector<8x32xf32>
    %27 = vector.extract_strided_slice %8 {offsets = [0, 0], sizes = [8, 8], strides = [1, 1]} : vector<8x32xf32> to vector<8x8xf32>
    %28 = vector.shape_cast %27 : vector<8x8xf32> to vector<1x8x8xf32>
    %29 = vector.extract_strided_slice %17 {offsets = [0, 0], sizes = [8, 8], strides = [1, 1]} : vector<8x32xf32> to vector<8x8xf32>
    %30 = vector.shape_cast %29 : vector<8x8xf32> to vector<1x8x8xf32>
    %31 = vector.extract_strided_slice %26 {offsets = [0, 0], sizes = [8, 8], strides = [1, 1]} : vector<8x32xf32> to vector<8x8xf32>
    %32 = vector.shape_cast %31 : vector<8x8xf32> to vector<1x8x8xf32>
    "tpu.trace_start"() <{level = 10 : i32, message = "bqd,bkd->bqk"}> : () -> ()
    %cst_26 = arith.constant dense<0.000000e+00> : vector<1x8x8xf32>
    %33 = tpu.matmul %28, %30, %cst_26 {dimension_numbers = #tpu.dot_dimension_numbers<[2], [2], [1], [1], [0, 0, 0, 1, 1, 1], [0], [0]>} : vector<1x8x8xf32>, vector<1x8x8xf32>, vector<1x8x8xf32> -> vector<1x8x8xf32>
    "tpu.trace_stop"() : () -> ()
    %cst_27 = arith.constant dense<0xFF800000> : vector<1x8xf32>
    %34 = vector.multi_reduction <maximumf>, %33, %cst_27 [2] : vector<1x8x8xf32> to vector<1x8xf32>
    %35 = vector.shape_cast %34 : vector<1x8xf32> to vector<1x8x1xf32>
    %36 = vector.broadcast %35 : vector<1x8x1xf32> to vector<1x8x8xf32>
    %37 = arith.subf %33, %36 : vector<1x8x8xf32>
    %38 = math.exp %37 : vector<1x8x8xf32>
    %cst_28 = arith.constant dense<0.000000e+00> : vector<1x8xf32>
    %39 = vector.multi_reduction <add>, %38, %cst_28 [2] : vector<1x8x8xf32> to vector<1x8xf32>
    %40 = vector.shape_cast %39 : vector<1x8xf32> to vector<1x8x1xf32>
    "tpu.trace_start"() <{level = 10 : i32, message = "bqk,bkd->bqd"}> : () -> ()
    %cst_29 = arith.constant dense<0.000000e+00> : vector<1x8x8xf32>
    %41 = tpu.matmul %38, %32, %cst_29 {dimension_numbers = #tpu.dot_dimension_numbers<[2], [1], [1], [2], [0, 0, 0, 1, 1, 2], [0], [0]>} : vector<1x8x8xf32>, vector<1x8x8xf32>, vector<1x8x8xf32> -> vector<1x8x8xf32>
    "tpu.trace_stop"() : () -> ()
    %42 = tpu.reciprocal %40 : vector<1x8x1xf32> -> vector<1x8x1xf32>
    %43 = vector.broadcast %42 : vector<1x8x1xf32> to vector<1x8x8xf32>
    %44 = arith.mulf %41, %43 : vector<1x8x8xf32>
    %45 = vector.shape_cast %44 : vector<1x8x8xf32> to vector<8x8xf32>
    %c0_30 = arith.constant 0 : index
    %c0_31 = arith.constant 0 : index
    %46 = vector.load %arg9[%c0_30, %c0_31] : memref<8x32xf32, #tpu.memory_space<vmem>>, vector<8x8xf32>
    tpu.vector_store %arg9[%c0_30, %c0_31], %45 {strides = array<i32>} : memref<8x32xf32, #tpu.memory_space<vmem>>, vector<8x8xf32>,
    %47 = vector.extract_strided_slice %8 {offsets = [0, 8], sizes = [8, 8], strides = [1, 1]} : vector<8x32xf32> to vector<8x8xf32>
    %48 = vector.shape_cast %47 : vector<8x8xf32> to vector<1x8x8xf32>
    %49 = vector.extract_strided_slice %17 {offsets = [0, 8], sizes = [8, 8], strides = [1, 1]} : vector<8x32xf32> to vector<8x8xf32>
    %50 = vector.shape_cast %49 : vector<8x8xf32> to vector<1x8x8xf32>
    %51 = vector.extract_strided_slice %26 {offsets = [0, 8], sizes = [8, 8], strides = [1, 1]} : vector<8x32xf32> to vector<8x8xf32>
    %52 = vector.shape_cast %51 : vector<8x8xf32> to vector<1x8x8xf32>
    "tpu.trace_start"() <{level = 10 : i32, message = "bqd,bkd->bqk"}> : () -> ()
    %cst_32 = arith.constant dense<0.000000e+00> : vector<1x8x8xf32>
    %53 = tpu.matmul %48, %50, %cst_32 {dimension_numbers = #tpu.dot_dimension_numbers<[2], [2], [1], [1], [0, 0, 0, 1, 1, 1], [0], [0]>} : vector<1x8x8xf32>, vector<1x8x8xf32>, vector<1x8x8xf32> -> vector<1x8x8xf32>
    "tpu.trace_stop"() : () -> ()
    %cst_33 = arith.constant dense<0xFF800000> : vector<1x8xf32>
    %54 = vector.multi_reduction <maximumf>, %53, %cst_33 [2] : vector<1x8x8xf32> to vector<1x8xf32>
    %55 = vector.shape_cast %54 : vector<1x8xf32> to vector<1x8x1xf32>
    %56 = vector.broadcast %55 : vector<1x8x1xf32> to vector<1x8x8xf32>
    %57 = arith.subf %53, %56 : vector<1x8x8xf32>
    %58 = math.exp %57 : vector<1x8x8xf32>
    %cst_34 = arith.constant dense<0.000000e+00> : vector<1x8xf32>
    %59 = vector.multi_reduction <add>, %58, %cst_34 [2] : vector<1x8x8xf32> to vector<1x8xf32>
    %60 = vector.shape_cast %59 : vector<1x8xf32> to vector<1x8x1xf32>
    "tpu.trace_start"() <{level = 10 : i32, message = "bqk,bkd->bqd"}> : () -> ()
    %cst_35 = arith.constant dense<0.000000e+00> : vector<1x8x8xf32>
    %61 = tpu.matmul %58, %52, %cst_35 {dimension_numbers = #tpu.dot_dimension_numbers<[2], [1], [1], [2], [0, 0, 0, 1, 1, 2], [0], [0]>} : vector<1x8x8xf32>, vector<1x8x8xf32>, vector<1x8x8xf32> -> vector<1x8x8xf32>
    "tpu.trace_stop"() : () -> ()
    %62 = tpu.reciprocal %60 : vector<1x8x1xf32> -> vector<1x8x1xf32>
    %63 = vector.broadcast %62 : vector<1x8x1xf32> to vector<1x8x8xf32>
    %64 = arith.mulf %61, %63 : vector<1x8x8xf32>
    %65 = vector.shape_cast %64 : vector<1x8x8xf32> to vector<8x8xf32>
    %c0_36 = arith.constant 0 : index
    %c8 = arith.constant 8 : index
    %66 = vector.load %arg9[%c0_36, %c8] : memref<8x32xf32, #tpu.memory_space<vmem>>, vector<8x8xf32>
    tpu.vector_store %arg9[%c0_36, %c8], %65 {strides = array<i32>} : memref<8x32xf32, #tpu.memory_space<vmem>>, vector<8x8xf32>,
    %67 = vector.extract_strided_slice %8 {offsets = [0, 16], sizes = [8, 8], strides = [1, 1]} : vector<8x32xf32> to vector<8x8xf32>
    %68 = vector.shape_cast %67 : vector<8x8xf32> to vector<1x8x8xf32>
    %69 = vector.extract_strided_slice %17 {offsets = [0, 16], sizes = [8, 8], strides = [1, 1]} : vector<8x32xf32> to vector<8x8xf32>
    %70 = vector.shape_cast %69 : vector<8x8xf32> to vector<1x8x8xf32>
    %71 = vector.extract_strided_slice %26 {offsets = [0, 16], sizes = [8, 8], strides = [1, 1]} : vector<8x32xf32> to vector<8x8xf32>
    %72 = vector.shape_cast %71 : vector<8x8xf32> to vector<1x8x8xf32>
    "tpu.trace_start"() <{level = 10 : i32, message = "bqd,bkd->bqk"}> : () -> ()
    %cst_37 = arith.constant dense<0.000000e+00> : vector<1x8x8xf32>
    %73 = tpu.matmul %68, %70, %cst_37 {dimension_numbers = #tpu.dot_dimension_numbers<[2], [2], [1], [1], [0, 0, 0, 1, 1, 1], [0], [0]>} : vector<1x8x8xf32>, vector<1x8x8xf32>, vector<1x8x8xf32> -> vector<1x8x8xf32>
    "tpu.trace_stop"() : () -> ()
    %cst_38 = arith.constant dense<0xFF800000> : vector<1x8xf32>
    %74 = vector.multi_reduction <maximumf>, %73, %cst_38 [2] : vector<1x8x8xf32> to vector<1x8xf32>
    %75 = vector.shape_cast %74 : vector<1x8xf32> to vector<1x8x1xf32>
    %76 = vector.broadcast %75 : vector<1x8x1xf32> to vector<1x8x8xf32>
    %77 = arith.subf %73, %76 : vector<1x8x8xf32>
    %78 = math.exp %77 : vector<1x8x8xf32>
    %cst_39 = arith.constant dense<0.000000e+00> : vector<1x8xf32>
    %79 = vector.multi_reduction <add>, %78, %cst_39 [2] : vector<1x8x8xf32> to vector<1x8xf32>
    %80 = vector.shape_cast %79 : vector<1x8xf32> to vector<1x8x1xf32>
    "tpu.trace_start"() <{level = 10 : i32, message = "bqk,bkd->bqd"}> : () -> ()
    %cst_40 = arith.constant dense<0.000000e+00> : vector<1x8x8xf32>
    %81 = tpu.matmul %78, %72, %cst_40 {dimension_numbers = #tpu.dot_dimension_numbers<[2], [1], [1], [2], [0, 0, 0, 1, 1, 2], [0], [0]>} : vector<1x8x8xf32>, vector<1x8x8xf32>, vector<1x8x8xf32> -> vector<1x8x8xf32>
    "tpu.trace_stop"() : () -> ()
    %82 = tpu.reciprocal %80 : vector<1x8x1xf32> -> vector<1x8x1xf32>
    %83 = vector.broadcast %82 : vector<1x8x1xf32> to vector<1x8x8xf32>
    %84 = arith.mulf %81, %83 : vector<1x8x8xf32>
    %85 = vector.shape_cast %84 : vector<1x8x8xf32> to vector<8x8xf32>
    %c0_41 = arith.constant 0 : index
    %c16 = arith.constant 16 : index
    %86 = vector.load %arg9[%c0_41, %c16] : memref<8x32xf32, #tpu.memory_space<vmem>>, vector<8x8xf32>
    tpu.vector_store %arg9[%c0_41, %c16], %85 {strides = array<i32>} : memref<8x32xf32, #tpu.memory_space<vmem>>, vector<8x8xf32>,
    %87 = vector.extract_strided_slice %8 {offsets = [0, 24], sizes = [8, 8], strides = [1, 1]} : vector<8x32xf32> to vector<8x8xf32>
    %88 = vector.shape_cast %87 : vector<8x8xf32> to vector<1x8x8xf32>
    %89 = vector.extract_strided_slice %17 {offsets = [0, 24], sizes = [8, 8], strides = [1, 1]} : vector<8x32xf32> to vector<8x8xf32>
    %90 = vector.shape_cast %89 : vector<8x8xf32> to vector<1x8x8xf32>
    %91 = vector.extract_strided_slice %26 {offsets = [0, 24], sizes = [8, 8], strides = [1, 1]} : vector<8x32xf32> to vector<8x8xf32>
    %92 = vector.shape_cast %91 : vector<8x8xf32> to vector<1x8x8xf32>
    "tpu.trace_start"() <{level = 10 : i32, message = "bqd,bkd->bqk"}> : () -> ()
    %cst_42 = arith.constant dense<0.000000e+00> : vector<1x8x8xf32>
    %93 = tpu.matmul %88, %90, %cst_42 {dimension_numbers = #tpu.dot_dimension_numbers<[2], [2], [1], [1], [0, 0, 0, 1, 1, 1], [0], [0]>} : vector<1x8x8xf32>, vector<1x8x8xf32>, vector<1x8x8xf32> -> vector<1x8x8xf32>
    "tpu.trace_stop"() : () -> ()
    %cst_43 = arith.constant dense<0xFF800000> : vector<1x8xf32>
    %94 = vector.multi_reduction <maximumf>, %93, %cst_43 [2] : vector<1x8x8xf32> to vector<1x8xf32>
    %95 = vector.shape_cast %94 : vector<1x8xf32> to vector<1x8x1xf32>
    %96 = vector.broadcast %95 : vector<1x8x1xf32> to vector<1x8x8xf32>
    %97 = arith.subf %93, %96 : vector<1x8x8xf32>
    %98 = math.exp %97 : vector<1x8x8xf32>
    %cst_44 = arith.constant dense<0.000000e+00> : vector<1x8xf32>
    %99 = vector.multi_reduction <add>, %98, %cst_44 [2] : vector<1x8x8xf32> to vector<1x8xf32>
    %100 = vector.shape_cast %99 : vector<1x8xf32> to vector<1x8x1xf32>
    "tpu.trace_start"() <{level = 10 : i32, message = "bqk,bkd->bqd"}> : () -> ()
    %cst_45 = arith.constant dense<0.000000e+00> : vector<1x8x8xf32>
    %101 = tpu.matmul %98, %92, %cst_45 {dimension_numbers = #tpu.dot_dimension_numbers<[2], [1], [1], [2], [0, 0, 0, 1, 1, 2], [0], [0]>} : vector<1x8x8xf32>, vector<1x8x8xf32>, vector<1x8x8xf32> -> vector<1x8x8xf32>
    "tpu.trace_stop"() : () -> ()
    %102 = tpu.reciprocal %100 : vector<1x8x1xf32> -> vector<1x8x1xf32>
    %103 = vector.broadcast %102 : vector<1x8x1xf32> to vector<1x8x8xf32>
    %104 = arith.mulf %101, %103 : vector<1x8x8xf32>
    %105 = vector.shape_cast %104 : vector<1x8x8xf32> to vector<8x8xf32>
    %c0_46 = arith.constant 0 : index
    %c24 = arith.constant 24 : index
    %106 = vector.load %arg9[%c0_46, %c24] : memref<8x32xf32, #tpu.memory_space<vmem>>, vector<8x8xf32>
    tpu.vector_store %arg9[%c0_46, %c24], %105 {strides = array<i32>} : memref<8x32xf32, #tpu.memory_space<vmem>>, vector<8x8xf32>,
    %c0_47 = arith.constant 0 : index
    %c0_48 = arith.constant 0 : index
    %107 = vector.load %arg9[%c0_47, %c0_48] : memref<8x32xf32, #tpu.memory_space<vmem>>, vector<8x32xf32>
    %c0_49 = arith.constant 0 : index
    %c0_50 = arith.constant 0 : index
    %108 = vector.load %arg6[%c0_49, %c0_50] : memref<32x32xf32, #tpu.memory_space<vmem>>, vector<32x32xf32>
    %cst_51 = arith.constant dense<0.000000e+00> : vector<8x32xf32>
    %109 = tpu.matmul %107, %108, %cst_51 {dimension_numbers = #tpu.dot_dimension_numbers<[1], [0], [0], [1], [0, 0, 1, 1], [], []>} : vector<8x32xf32>, vector<32x32xf32>, vector<8x32xf32> -> vector<8x32xf32>
    %c0_52 = arith.constant 0 : index
    %c0_53 = arith.constant 0 : index
    %110 = vector.load %arg7[%c0_52, %c0_53] : memref<1x32xf32, #tpu.memory_space<vmem>>, vector<1x32xf32>
    %111 = vector.broadcast %110 : vector<1x32xf32> to vector<8x32xf32>
    %112 = arith.addf %109, %111 : vector<8x32xf32>
    %113 = vector.shape_cast %112 : vector<8x32xf32> to vector<1x8x32xf32>
    %c0_54 = arith.constant 0 : index
    %c0_55 = arith.constant 0 : index
    %c0_56 = arith.constant 0 : index
    %114 = vector.load %arg8[%c0_54, %c0_55, %c0_56] : memref<1x8x32xf32, #tpu.memory_space<vmem>>, vector<1x8x32xf32>
    tpu.vector_store %arg8[%c0_54, %c0_55, %c0_56], %113 {strides = array<i32>} : memref<1x8x32xf32, #tpu.memory_space<vmem>>, vector<1x8x32xf32>,
    return
  }
  func.func @transform_0(%arg0: i32) -> (i32, i32, i32) {
    %c0_i32 = arith.constant 0 : i32
    %c0_i32_0 = arith.constant 0 : i32
    %c0_i32_1 = arith.constant 0 : i32
    return %arg0, %c0_i32, %c0_i32_0 : i32, i32, i32
  }
  func.func @transform_1(%arg0: i32) -> (i32, i32, i32) {
    %c0_i32 = arith.constant 0 : i32
    %c0_i32_0 = arith.constant 0 : i32
    %c0_i32_1 = arith.constant 0 : i32
    return %arg0, %c0_i32, %c0_i32_0 : i32, i32, i32
  }
  func.func @transform_2(%arg0: i32) -> (i32, i32, i32) {
    %c0_i32 = arith.constant 0 : i32
    %c0_i32_0 = arith.constant 0 : i32
    %c0_i32_1 = arith.constant 0 : i32
    return %arg0, %c0_i32, %c0_i32_0 : i32, i32, i32
  }
  func.func @transform_3(%arg0: i32) -> (i32, i32, i32) {
    %c0_i32 = arith.constant 0 : i32
    %c0_i32_0 = arith.constant 0 : i32
    %c0_i32_1 = arith.constant 0 : i32
    %c0_i32_2 = arith.constant 0 : i32
    return %c0_i32, %c0_i32_0, %c0_i32_1 : i32, i32, i32
  }
  func.func @transform_4(%arg0: i32) -> (i32, i32, i32) {
    %c0_i32 = arith.constant 0 : i32
    %c0_i32_0 = arith.constant 0 : i32
    %c0_i32_1 = arith.constant 0 : i32
    %c0_i32_2 = arith.constant 0 : i32
    return %c0_i32, %c0_i32_0, %c0_i32_1 : i32, i32, i32
  }
  func.func @transform_5(%arg0: i32) -> (i32, i32) {
    %c0_i32 = arith.constant 0 : i32
    %c0_i32_0 = arith.constant 0 : i32
    %c0_i32_1 = arith.constant 0 : i32
    return %c0_i32, %c0_i32_0 : i32, i32
  }
  func.func @transform_6(%arg0: i32) -> (i32, i32) {
    %c0_i32 = arith.constant 0 : i32
    %c0_i32_0 = arith.constant 0 : i32
    %c0_i32_1 = arith.constant 0 : i32
    return %c0_i32, %c0_i32_0 : i32, i32
  }
  func.func @transform_7(%arg0: i32) -> (i32, i32, i32) {
    %c0_i32 = arith.constant 0 : i32
    %c0_i32_0 = arith.constant 0 : i32
    %c0_i32_1 = arith.constant 0 : i32
    return %arg0, %c0_i32, %c0_i32_0 : i32, i32, i32
  }
}

</mosaic_0001>

<llo_original>
// kernel: tpu_custom_call.1
$region0: #{tpu_custom_call.1}
  #allocation0 [shape = 'u32[]', space=smem, size = 0x4, offset = 0x4, fixed_abs, tag = 'smem constant byte address 0x4 - core index']
  #allocation1 [shape = 'u32[144,128]{1,0:T(1,128)}', space=vmem, size = 0x12000, scoped, tag = 'internal scratch']
  #allocation2 [shape = 'f32[8,32]{1,0:T(8,128)}', space=vmem, size = 0x1000, scoped, tag = 'scratch operand']
  %s0 = inlined_call_operand.hbm [shape: f32[2,8,32], index: 0, kind: input, shape index: {}]
  %s1 = inlined_call_operand.hbm [shape: f32[2,8,32], index: 1, kind: input, shape index: {}]
  %s2 = inlined_call_operand.hbm [shape: f32[2,8,32], index: 2, kind: input, shape index: {}]
  %s3 = inlined_call_operand.hbm [shape: f32[3,32,32], index: 3, kind: input, shape index: {}]
  %s4 = inlined_call_operand.vmem [shape: f32[3,1,32], index: 4, kind: input, shape index: {}]
  %s5 = inlined_call_operand.hbm [shape: f32[32,32], index: 5, kind: input, shape index: {}]
  %s6 = inlined_call_operand.vmem [shape: f32[1,32], index: 6, kind: input, shape index: {}]
  %s7 = inlined_call_operand.hbm [shape: f32[2,8,32], index: 7, kind: output, shape index: {}]
  %s8 = sld [smem:[#allocation0]]
  $region81: #{tpu_custom_call.1} parent=0
    _
  %s10 = ssub.s32 1, %s8
  %s11 = scalar_select 0, %s10, %s8
  $region1: #{tpu_custom_call.1} parent=0
    #allocation3 [shape = 'u8[8192]{0}', space=vmem, size = 0x2000, scoped, tag = 'input window, operand 0']
    #allocation4 [shape = 's32[2]{0}', space=sflag, size = 0x8, scoped, tag = 'scoped memory for tpu_custom_call.1']
    #allocation5 [shape = 's32[2]{0}', space=sflag, size = 0x8, scoped, tag = 'scoped memory for tpu_custom_call.1']
    #allocation6 [shape = 'u8[8192]{0}', space=vmem, size = 0x2000, scoped, tag = 'input window, operand 1']
    #allocation7 [shape = 's32[2]{0}', space=sflag, size = 0x8, scoped, tag = 'scoped memory for tpu_custom_call.1']
    #allocation8 [shape = 'u8[8192]{0}', space=vmem, size = 0x2000, scoped, tag = 'input window, operand 2']
    #allocation9 [shape = 'u8[49152]{0}', space=vmem, size = 0xc000, scoped, tag = 'input window, operand 3, single buffered']
    #allocation10 [shape = 's32[1]{0}', space=sflag, size = 0x4, scoped, tag = 'scoped memory for tpu_custom_call.1']
    #allocation11 [shape = 'u8[16384]{0}', space=vmem, size = 0x4000, scoped, tag = 'input window, operand 5, single buffered']
    #allocation12 [shape = 'u8[8192]{0}', space=vmem, size = 0x2000, scoped, tag = 'output window, operand 0']
    %12 = vsyncpa [#allocation4], 0
    %s13 = scalar_lea.sflag [#allocation4], 1
    %14 = vsyncpa %s13, 0
    %15 = vsyncpa [#allocation7], 0
    %s16 = scalar_lea.sflag [#allocation7], 1
    %17 = vsyncpa %s16, 0
    %18 = vsyncpa [#allocation10], 0
    %19 = vsyncpa [#allocation5], 0
    %s20 = scalar_lea.sflag [#allocation5], 1
    %21 = vsyncpa %s20, 0
    loop: start=0, step=1, limit=4
    $region2: #{tpu_custom_call.1} parent=1 // loop_pre_header
      _
    $region3: #{tpu_custom_call.1} parent=1 // loop_header
      %s23 = sphi 0, %s27
      %p24 = scmp.ge.s32.totalorder %s23, 4
      %s33 = sphi 0, %s35
      %s36 = sphi 0, %s33
      %s37 = sphi 0, %s36
      %s53 = sphi 0, %s37
      %s59 = sphi 0, %s61
      %s62 = sphi 0, %s59
      %s63 = sphi 0, %s62
      %s79 = sphi 0, %s63
      %s85 = sphi 0, %s87
      %s88 = sphi 0, %s85
      %s89 = sphi 0, %s88
      %s105 = sphi 0, %s89
      %s109 = sphi 0, %s109
      %s111 = sphi 0, %s109
      %s112 = sphi 0, %s111
      %s126 = sphi 0, %s112
      %s130 = sphi 0, %s130
      %s132 = sphi 0, %s130
      %s133 = sphi 0, %s132
      %s147 = sphi 0, %s133
      %s151 = sphi 0, %s151
      %s153 = sphi 0, %s151
      %s154 = sphi 0, %s153
      %s168 = sphi 0, %s154
      %s172 = sphi 0, %s172
      %s174 = sphi 0, %s172
      %s175 = sphi 0, %s174
      %s189 = sphi 0, %s175
      %s195 = sphi 0, %s197
      %s198 = sphi 0, %s195
      %s199 = sphi 0, %s198
      %s215 = sphi 0, %s199
    $region4: #{tpu_custom_call.1} parent=1 // loop_header_branch
      %26 = sbr.rel (%p24) target = $region8
    $region5: #{tpu_custom_call.1} parent=1 // loop_body
      %s28 = ssub.s32 %s23, 1
      %s29 = ssub.s32 %s23, 2
      %s30 = sadd.s32 %s23, 1
      %s31 = ssub.s32 %s23, %s30
      %p32 = scmp.eq.s32.totalorder %s31, 0
      %s34 = sadd.s32 %s33, 1
      %s35 = scalar_select %p32, %s33, %s34
      %p38 = pneg %p32
      %p39 = scmp.eq.s32.totalorder %s23, 1
      %p40 = por %p38, %p39
      %p41 = scmp.ne.s32.totalorder %s33, %s36
      %p42 = scmp.eq.s32.totalorder %s23, 0
      %p43 = por %p41, %p42
      %p44 = scmp.ne.s32.totalorder %s33, %s36
      %p45 = scmp.eq.s32.totalorder %s28, 1
      %p46 = por %p44, %p45
      %p47 = scmp.ne.s32.totalorder %s36, %s37
      %p48 = scmp.eq.s32.totalorder %s28, 0
      %p49 = por %p47, %p48
      %p50 = scmp.ne.s32.totalorder %s36, %s37
      %p51 = scmp.eq.s32.totalorder %s29, 1
      %p52 = por %p50, %p51
      %p54 = scmp.ne.s32.totalorder %s37, %s53
      %p55 = scmp.eq.s32.totalorder %s29, 0
      %p56 = por %p54, %p55
      %s57 = ssub.s32 %s23, %s30
      %p58 = scmp.eq.s32.totalorder %s57, 0
      %s60 = sadd.s32 %s59, 1
      %s61 = scalar_select %p58, %s59, %s60
      %p64 = pneg %p58
      %p65 = scmp.eq.s32.totalorder %s23, 1
      %p66 = por %p64, %p65
      %p67 = scmp.ne.s32.totalorder %s59, %s62
      %p68 = scmp.eq.s32.totalorder %s23, 0
      %p69 = por %p67, %p68
      %p70 = scmp.ne.s32.totalorder %s59, %s62
      %p71 = scmp.eq.s32.totalorder %s28, 1
      %p72 = por %p70, %p71
      %p73 = scmp.ne.s32.totalorder %s62, %s63
      %p74 = scmp.eq.s32.totalorder %s28, 0
      %p75 = por %p73, %p74
      %p76 = scmp.ne.s32.totalorder %s62, %s63
      %p77 = scmp.eq.s32.totalorder %s29, 1
      %p78 = por %p76, %p77
      %p80 = scmp.ne.s32.totalorder %s63, %s79
      %p81 = scmp.eq.s32.totalorder %s29, 0
      %p82 = por %p80, %p81
      %s83 = ssub.s32 %s23, %s30
      %p84 = scmp.eq.s32.totalorder %s83, 0
      %s86 = sadd.s32 %s85, 1
      %s87 = scalar_select %p84, %s85, %s86
      %p90 = pneg %p84
      %p91 = scmp.eq.s32.totalorder %s23, 1
      %p92 = por %p90, %p91
      %p93 = scmp.ne.s32.totalorder %s85, %s88
      %p94 = scmp.eq.s32.totalorder %s23, 0
      %p95 = por %p93, %p94
      %p96 = scmp.ne.s32.totalorder %s85, %s88
      %p97 = scmp.eq.s32.totalorder %s28, 1
      %p98 = por %p96, %p97
      %p99 = scmp.ne.s32.totalorder %s88, %s89
      %p100 = scmp.eq.s32.totalorder %s28, 0
      %p101 = por %p99, %p100
      %p102 = scmp.ne.s32.totalorder %s88, %s89
      %p103 = scmp.eq.s32.totalorder %s29, 1
      %p104 = por %p102, %p103
      %p106 = scmp.ne.s32.totalorder %s89, %s105
      %p107 = scmp.eq.s32.totalorder %s29, 0
      %p108 = por %p106, %p107
      %s110 = sadd.s32 %s109, 1
      %p113 = scmp.eq.s32.totalorder %s23, 1
      %p114 = scmp.ne.s32.totalorder %s109, %s111
      %p115 = scmp.eq.s32.totalorder %s23, 0
      %p116 = por %p114, %p115
      %p117 = scmp.ne.s32.totalorder %s109, %s111
      %p118 = scmp.eq.s32.totalorder %s28, 1
      %p119 = por %p117, %p118
      %p120 = scmp.ne.s32.totalorder %s111, %s112
      %p121 = scmp.eq.s32.totalorder %s28, 0
      %p122 = por %p120, %p121
      %p123 = scmp.ne.s32.totalorder %s111, %s112
      %p124 = scmp.eq.s32.totalorder %s29, 1
      %p125 = por %p123, %p124
      %p127 = scmp.ne.s32.totalorder %s112, %s126
      %p128 = scmp.eq.s32.totalorder %s29, 0
      %p129 = por %p127, %p128
      %s131 = sadd.s32 %s130, 1
      %p134 = scmp.eq.s32.totalorder %s23, 1
      %p135 = scmp.ne.s32.totalorder %s130, %s132
      %p136 = scmp.eq.s32.totalorder %s23, 0
      %p137 = por %p135, %p136
      %p138 = scmp.ne.s32.totalorder %s130, %s132
      %p139 = scmp.eq.s32.totalorder %s28, 1
      %p140 = por %p138, %p139
      %p141 = scmp.ne.s32.totalorder %s132, %s133
      %p142 = scmp.eq.s32.totalorder %s28, 0
      %p143 = por %p141, %p142
      %p144 = scmp.ne.s32.totalorder %s132, %s133
      %p145 = scmp.eq.s32.totalorder %s29, 1
      %p146 = por %p144, %p145
      %p148 = scmp.ne.s32.totalorder %s133, %s147
      %p149 = scmp.eq.s32.totalorder %s29, 0
      %p150 = por %p148, %p149
      %s152 = sadd.s32 %s151, 1
      %p155 = scmp.eq.s32.totalorder %s23, 1
      %p156 = scmp.ne.s32.totalorder %s151, %s153
      %p157 = scmp.eq.s32.totalorder %s23, 0
      %p158 = por %p156, %p157
      %p159 = scmp.ne.s32.totalorder %s151, %s153
      %p160 = scmp.eq.s32.totalorder %s28, 1
      %p161 = por %p159, %p160
      %p162 = scmp.ne.s32.totalorder %s153, %s154
      %p163 = scmp.eq.s32.totalorder %s28, 0
      %p164 = por %p162, %p163
      %p165 = scmp.ne.s32.totalorder %s153, %s154
      %p166 = scmp.eq.s32.totalorder %s29, 1
      %p167 = por %p165, %p166
      %p169 = scmp.ne.s32.totalorder %s154, %s168
      %p170 = scmp.eq.s32.totalorder %s29, 0
      %p171 = por %p169, %p170
      %s173 = sadd.s32 %s172, 1
      %p176 = scmp.eq.s32.totalorder %s23, 1
      %p177 = scmp.ne.s32.totalorder %s172, %s174
      %p178 = scmp.eq.s32.totalorder %s23, 0
      %p179 = por %p177, %p178
      %p180 = scmp.ne.s32.totalorder %s172, %s174
      %p181 = scmp.eq.s32.totalorder %s28, 1
      %p182 = por %p180, %p181
      %p183 = scmp.ne.s32.totalorder %s174, %s175
      %p184 = scmp.eq.s32.totalorder %s28, 0
      %p185 = por %p183, %p184
      %p186 = scmp.ne.s32.totalorder %s174, %s175
      %p187 = scmp.eq.s32.totalorder %s29, 1
      %p188 = por %p186, %p187
      %p190 = scmp.ne.s32.totalorder %s175, %s189
      %p191 = scmp.eq.s32.totalorder %s29, 0
      %p192 = por %p190, %p191
      %s193 = ssub.s32 %s23, %s30
      %p194 = scmp.eq.s32.totalorder %s193, 0
      %s196 = sadd.s32 %s195, 1
      %s197 = scalar_select %p194, %s195, %s196
      %p200 = pneg %p194
      %p201 = scmp.eq.s32.totalorder %s23, 1
      %p202 = por %p200, %p201
      %p203 = scmp.ne.s32.totalorder %s195, %s198
      %p204 = scmp.eq.s32.totalorder %s23, 0
      %p205 = por %p203, %p204
      %p206 = scmp.ne.s32.totalorder %s195, %s198
      %p207 = scmp.eq.s32.totalorder %s28, 1
      %p208 = por %p206, %p207
      %p209 = scmp.ne.s32.totalorder %s198, %s199
      %p210 = scmp.eq.s32.totalorder %s28, 0
      %p211 = por %p209, %p210
      %p212 = scmp.ne.s32.totalorder %s198, %s199
      %p213 = scmp.eq.s32.totalorder %s29, 1
      %p214 = por %p212, %p213
      %p216 = scmp.ne.s32.totalorder %s199, %s215
      %p217 = scmp.eq.s32.totalorder %s29, 0
      %p218 = por %p216, %p217
      %p219 = scmp.le.s32.totalorder 1, %s23
      %p220 = scmp.lt.s32.totalorder %s23, 3
      %p221 = pnand %p219, %p220
      %p222 = pneg %p221
      // Predicated region
      $region9: #{tpu_custom_call.1} parent=5 // pred_check
        _
      $region10: #{tpu_custom_call.1} parent=5 // pred_check_branch
        %224 = sbr.rel (%p221) target = $region12
      $region11: #{tpu_custom_call.1} parent=5 // pred_region
        %s225 = ssub.s32 %s23, 1
        // Predicated region
        $region13: #{tpu_custom_call.1} parent=11 // pred_check
          %p226 = pneg %p122
        $region14: #{tpu_custom_call.1} parent=11 // pred_check_branch
          %228 = sbr.rel (%p226) target = $region16
        $region15: #{tpu_custom_call.1} parent=11 // pred_region
          %s230 = ssub.s32 1536, 1536
          %231 = vsyncadd [#allocation10], %s230
          %s232 = sshll.u32 [#allocation9], 4
          %s233 = int_to_ptr.vmem [resolvable:$true] %s232
          %238 = dma.hbm_to_vmem [thread:$0]  %s3, 1536, %s233, [#allocation10], 128, 128, 8
        $region16: #{tpu_custom_call.1} parent=11 // pred_fallthru
          _
        // Predicated region
        $region17: #{tpu_custom_call.1} parent=11 // pred_check
          %p239 = pneg %p143
        $region18: #{tpu_custom_call.1} parent=11 // pred_check_branch
          %241 = sbr.rel (%p239) target = $region20
        $region19: #{tpu_custom_call.1} parent=11 // pred_region
          _
        $region20: #{tpu_custom_call.1} parent=11 // pred_fallthru
          _
        // Predicated region
        $region21: #{tpu_custom_call.1} parent=11 // pred_check
          %p242 = pneg %p164
        $region22: #{tpu_custom_call.1} parent=11 // pred_check_branch
          %244 = sbr.rel (%p242) target = $region24
        $region23: #{tpu_custom_call.1} parent=11 // pred_region
          %s246 = ssub.s32 512, 512
          %247 = vsyncadd [#allocation10], %s246
          %s248 = sshll.u32 [#allocation11], 4
          %s249 = int_to_ptr.vmem [resolvable:$true] %s248
          %254 = dma.hbm_to_vmem [thread:$0]  %s5, 512, %s249, [#allocation10], 128, 128, 8
        $region24: #{tpu_custom_call.1} parent=11 // pred_fallthru
          _
        // Predicated region
        $region25: #{tpu_custom_call.1} parent=11 // pred_check
          %p255 = pneg %p185
        $region26: #{tpu_custom_call.1} parent=11 // pred_check_branch
          %257 = sbr.rel (%p255) target = $region28
        $region27: #{tpu_custom_call.1} parent=11 // pred_region
          _
        $region28: #{tpu_custom_call.1} parent=11 // pred_fallthru
          _
      $region12: #{tpu_custom_call.1} parent=5 // pred_fallthru
        _
      %p258 = scmp.lt.s32.totalorder %s23, 2
      // Predicated region
      $region29: #{tpu_custom_call.1} parent=5 // pred_check
        %p259 = pneg %p258
      $region30: #{tpu_custom_call.1} parent=5 // pred_check_branch
        %261 = sbr.rel (%p259) target = $region32
      $region31: #{tpu_custom_call.1} parent=5 // pred_region
        // Predicated region
        $region33: #{tpu_custom_call.1} parent=31 // pred_check
          %p262 = pneg %p43
        $region34: #{tpu_custom_call.1} parent=31 // pred_check_branch
          %264 = sbr.rel (%p262) target = $region36
        $region35: #{tpu_custom_call.1} parent=31 // pred_region
          %s265 = sand.u32 %s33, 1
          %s266 = scalar_lea.sflag [#allocation4], %s265
          %s267 = sand.u32 %s33, 1
          %s268 = smul.addr %s267, 8
          %s269 = scalar_lea.vmem [#allocation3], %s268
          %s271 = ssub.s32 128, 128
          %272 = vsyncadd %s266, %s271
          %s273 = smul.addr %s23, 128
          %s274 = scalar_lea.hbm %s0, %s273
          %s276 = sshll.u32 %s269, 4
          %s277 = int_to_ptr.vmem [resolvable:$true] %s276
          %279 = dma.hbm_to_vmem [thread:$0]  %s274, 128, %s277, %s266
        $region36: #{tpu_custom_call.1} parent=31 // pred_fallthru
          _
        // Predicated region
        $region37: #{tpu_custom_call.1} parent=31 // pred_check
          %p280 = pneg %p69
        $region38: #{tpu_custom_call.1} parent=31 // pred_check_branch
          %282 = sbr.rel (%p280) target = $region40
        $region39: #{tpu_custom_call.1} parent=31 // pred_region
          %s283 = sand.u32 %s23, 1
          %s284 = scalar_lea.sflag [#allocation7], %s283
          %s285 = sand.u32 %s59, 1
          %s286 = smul.addr %s285, 8
          %s287 = scalar_lea.vmem [#allocation6], %s286
          %s289 = ssub.s32 128, 128
          %290 = vsyncadd %s284, %s289
          %s291 = smul.addr %s23, 128
          %s292 = scalar_lea.hbm %s1, %s291
          %s294 = sshll.u32 %s287, 4
          %s295 = int_to_ptr.vmem [resolvable:$true] %s294
          %297 = dma.hbm_to_vmem [thread:$0]  %s292, 128, %s295, %s284
        $region40: #{tpu_custom_call.1} parent=31 // pred_fallthru
          _
        // Predicated region
        $region41: #{tpu_custom_call.1} parent=31 // pred_check
          %p298 = pneg %p95
        $region42: #{tpu_custom_call.1} parent=31 // pred_check_branch
          %300 = sbr.rel (%p298) target = $region44
        $region43: #{tpu_custom_call.1} parent=31 // pred_region
          %s301 = sand.u32 %s23, 1
          %s302 = scalar_lea.sflag [#allocation7], %s301
          %s303 = sand.u32 %s85, 1
          %s304 = smul.addr %s303, 8
          %s305 = scalar_lea.vmem [#allocation8], %s304
          %s307 = ssub.s32 128, 128
          %308 = vsyncadd %s302, %s307
          %s309 = smul.addr %s23, 128
          %s310 = scalar_lea.hbm %s2, %s309
          %s312 = sshll.u32 %s305, 4
          %s313 = int_to_ptr.vmem [resolvable:$true] %s312
          %315 = dma.hbm_to_vmem [thread:$0]  %s310, 128, %s313, %s302
        $region44: #{tpu_custom_call.1} parent=31 // pred_fallthru
          _
      $region32: #{tpu_custom_call.1} parent=5 // pred_fallthru
        _
      %p316 = scmp.le.s32.totalorder 1, %s23
      %p317 = scmp.lt.s32.totalorder %s23, 3
      %p318 = pnand %p316, %p317
      %p319 = pneg %p318
      // Predicated region
      $region45: #{tpu_custom_call.1} parent=5 // pred_check
        _
      $region46: #{tpu_custom_call.1} parent=5 // pred_check_branch
        %321 = sbr.rel (%p318) target = $region48
      $region47: #{tpu_custom_call.1} parent=5 // pred_region
        %s322 = ssub.s32 %s23, 1
        %s323 = sand.u32 %s36, 1
        %s324 = scalar_lea.sflag [#allocation4], %s323
        %s325 = sand.u32 %s36, 1
        %s326 = smul.addr %s325, 8
        %s327 = scalar_lea.vmem [#allocation3], %s326
        // Predicated region
        $region49: #{tpu_custom_call.1} parent=47 // pred_check
          %p328 = pneg %p49
        $region50: #{tpu_custom_call.1} parent=47 // pred_check_branch
          %330 = sbr.rel (%p328) target = $region52
        $region51: #{tpu_custom_call.1} parent=47 // pred_region
          %331 = dma.done %s324, 128
        $region52: #{tpu_custom_call.1} parent=47 // pred_fallthru
          _
        %s332 = sand.u32 %s28, 1
        %s333 = scalar_lea.sflag [#allocation7], %s332
        %s334 = sand.u32 %s62, 1
        %s335 = smul.addr %s334, 8
        %s336 = scalar_lea.vmem [#allocation6], %s335
        // Predicated region
        $region53: #{tpu_custom_call.1} parent=47 // pred_check
          %p337 = pneg %p75
        $region54: #{tpu_custom_call.1} parent=47 // pred_check_branch
          %339 = sbr.rel (%p337) target = $region56
        $region55: #{tpu_custom_call.1} parent=47 // pred_region
          %340 = dma.done %s333, 128
        $region56: #{tpu_custom_call.1} parent=47 // pred_fallthru
          _
        %s341 = sand.u32 %s28, 1
        %s342 = scalar_lea.sflag [#allocation7], %s341
        %s343 = sand.u32 %s88, 1
        %s344 = smul.addr %s343, 8
        %s345 = scalar_lea.vmem [#allocation8], %s344
        // Predicated region
        $region57: #{tpu_custom_call.1} parent=47 // pred_check
          %p346 = pneg %p101
        $region58: #{tpu_custom_call.1} parent=47 // pred_check_branch
          %348 = sbr.rel (%p346) target = $region60
        $region59: #{tpu_custom_call.1} parent=47 // pred_region
          %349 = dma.done %s342, 128
        $region60: #{tpu_custom_call.1} parent=47 // pred_fallthru
          _
        // Predicated region
        $region61: #{tpu_custom_call.1} parent=47 // pred_check
          %p350 = pneg %p122
        $region62: #{tpu_custom_call.1} parent=47 // pred_check_branch
          %352 = sbr.rel (%p350) target = $region64
        $region63: #{tpu_custom_call.1} parent=47 // pred_region
          %353 = dma.done [#allocation10], 1536
        $region64: #{tpu_custom_call.1} parent=47 // pred_fallthru
          _
        // Predicated region
        $region65: #{tpu_custom_call.1} parent=47 // pred_check
          %p354 = pneg %p164
        $region66: #{tpu_custom_call.1} parent=47 // pred_check_branch
          %356 = sbr.rel (%p354) target = $region68
        $region67: #{tpu_custom_call.1} parent=47 // pred_region
          %357 = dma.done [#allocation10], 512
        $region68: #{tpu_custom_call.1} parent=47 // pred_fallthru
          _
        %s358 = sand.u32 %s36, 1
        %s359 = scalar_lea.sflag [#allocation4], %s358
        %s360 = sand.u32 %s36, 1
        %s361 = smul.addr %s360, 8
        %s362 = scalar_lea.vmem [#allocation3], %s361
        %p363 = pneg %p49
        %p364 = pneg %p46
        %s365 = sand.u32 %s28, 1
        %s366 = scalar_lea.sflag [#allocation7], %s365
        %s367 = sand.u32 %s62, 1
        %s368 = smul.addr %s367, 8
        %s369 = scalar_lea.vmem [#allocation6], %s368
        %p370 = pneg %p75
        %p371 = pneg %p72
        %s372 = sand.u32 %s28, 1
        %s373 = scalar_lea.sflag [#allocation7], %s372
        %s374 = sand.u32 %s88, 1
        %s375 = smul.addr %s374, 8
        %s376 = scalar_lea.vmem [#allocation8], %s375
        %p377 = pneg %p101
        %p378 = pneg %p98
        %p379 = pneg %p122
        %p380 = pneg %p119
        %p381 = pneg %p143
        %p382 = pneg %p140
        %p383 = pneg %p164
        %p384 = pneg %p161
        %p385 = pneg %p185
        %p386 = pneg %p182
        %p387 = pneg %p211
        %p388 = pneg %p208
        %s389 = sand.u32 %s198, 1
        %s390 = scalar_lea.sflag [#allocation5], %s389
        %s391 = sand.u32 %s198, 1
        %s392 = smul.addr %s391, 8
        %s393 = scalar_lea.vmem [#allocation12], %s392
        %v394 = vld [vmem:[%s327] sm:$0xff]
        %v395 = vld [vmem:[#allocation9] sm:$0xff]
        %v396 = vld [vmem:[#allocation9 + $0x8] sm:$0xff]
        %v397 = vld [vmem:[#allocation9 + $0x10] sm:$0xff]
        %v398 = vld [vmem:[#allocation9 + $0x18] sm:$0xff]
        %v399 = vld [vmem:[%s4] sm:$0x1]
        %v401 = vlaneseq
        %v402 = vshrl.u32 %v401, 7
        %v403 = vsub.s32 0, %v402
        %v404 = vrot.slane %v399, %v403
        %vm406 = vcmask 261120
        %v408 = vsel %vm406, %v394, 0
        %410 = vmatprep.subr.mxu0 0.0
        %411 = vmatpush1.msra.mxu0 0.0
        %412 = vmatprep.subr.mxu0 0.0
        %413 = vmatpush1.msra.mxu0 0.0
        %414 = vmatprep.subr.mxu0 0.0
        %415 = vmatpush1.msra.mxu0 0.0
        %416 = vmatprep.subr.mxu0 0.0
        %417 = vmatpush1.msra.mxu0 0.0
        %418 = vmatprep.subr.mxu0 0.0
        %419 = vmatpush1.msra.mxu0 0.0
        %420 = vmatprep.subr.mxu0 0.0
        %421 = vmatpush1.msra.mxu0 0.0
        %422 = vmatprep.subr.mxu0 0.0
        %423 = vmatpush1.msra.mxu0 0.0
        %424 = vmatprep.subr.mxu0 0.0
        %425 = vmatpush1.msra.mxu0 0.0
        %426 = vmatprep.subr.mxu0 0.0
        %427 = vmatpush1.msra.mxu0 0.0
        %428 = vmatprep.subr.mxu0 0.0
        %429 = vmatpush1.msra.mxu0 0.0
        %430 = vmatprep.subr.mxu0 0.0
        %431 = vmatpush1.msra.mxu0 0.0
        %432 = vmatprep.subr.mxu0 0.0
        %433 = vmatpush1.msra.mxu0 0.0
        %434 = vmatprep.subr.mxu0 0.0
        %435 = vmatpush1.msra.mxu0 %v398
        %436 = vmatprep.subr.mxu0 0.0
        %437 = vmatpush1.msra.mxu0 %v397
        %438 = vmatprep.subr.mxu0 0.0
        %439 = vmatpush1.msra.mxu0 %v396
        %440 = vmatprep.subr.mxu0 0.0
        %441 = vmatpush1.msra.mxu0 %v395
        %442 = vmatprep.subr.mxu0 0.0
        %443 = vmatpush2.msra.mxu0 0.0
        %444 = vmatprep.subr.mxu0 0.0
        %445 = vmatpush2.msra.mxu0 0.0
        %446 = vmatprep.subr.mxu0 0.0
        %447 = vmatpush2.msra.mxu0 0.0
        %448 = vmatprep.subr.mxu0 0.0
        %449 = vmatpush2.msra.mxu0 0.0
        %450 = vmatprep.subr.mxu0 0.0
        %451 = vmatpush2.msra.mxu0 0.0
        %452 = vmatprep.subr.mxu0 0.0
        %453 = vmatpush2.msra.mxu0 0.0
        %454 = vmatprep.subr.mxu0 0.0
        %455 = vmatpush2.msra.mxu0 0.0
        %456 = vmatprep.subr.mxu0 0.0
        %457 = vmatpush2.msra.mxu0 0.0
        %458 = vmatprep.subr.mxu0 0.0
        %459 = vmatpush2.msra.mxu0 0.0
        %460 = vmatprep.subr.mxu0 0.0
        %461 = vmatpush2.msra.mxu0 0.0
        %462 = vmatprep.subr.mxu0 0.0
        %463 = vmatpush2.msra.mxu0 0.0
        %464 = vmatprep.subr.mxu0 0.0
        %465 = vmatpush2.msra.mxu0 0.0
        %466 = vmatprep.subr.mxu0 0.0
        %467 = vmatpush2.msra.mxu0 0.0
        %468 = vmatprep.subr.mxu0 0.0
        %469 = vmatpush2.msra.mxu0 0.0
        %470 = vmatprep.subr.mxu0 0.0
        %471 = vmatpush2.msra.mxu0 0.0
        %472 = vmatprep.subr.mxu0 0.0
        %473 = vmatpush2.msra.mxu0 0.0
        %474 = vmatprep.mubr.f32.mxu0 0.0
        %475 = vmatmul.mubr.f32.gmra.mxu0 %v408
        %v476 = vpop.f32.mrf.mxu0
        %v477 = vadd.f32 %v404, %v476
        %v478 = vpop.f32.mrf.mxu0
        %479 = vdwg.mxu0
        %v480 = vld [vmem:[%s336] sm:$0xff]
        %s481 = scalar_lea.vmem [#allocation9], 32
        %v482 = vld [vmem:[%s481] sm:$0xff]
        %v483 = vld [vmem:[%s481 + $0x8] sm:$0xff]
        %v484 = vld [vmem:[%s481 + $0x10] sm:$0xff]
        %v485 = vld [vmem:[%s481 + $0x18] sm:$0xff]
        %s486 = scalar_lea.vmem %s4, 1
        %v487 = vld [vmem:[%s486] sm:$0x1]
        %v489 = vlaneseq
        %v490 = vshrl.u32 %v489, 7
        %v491 = vsub.s32 0, %v490
        %v492 = vrot.slane %v487, %v491
        %v495 = vsel %vm406, %v480, 0
        %497 = vmatprep.subr.mxu0 0.0
        %498 = vmatpush1.msra.mxu0 0.0
        %499 = vmatprep.subr.mxu0 0.0
        %500 = vmatpush1.msra.mxu0 0.0
        %501 = vmatprep.subr.mxu0 0.0
        %502 = vmatpush1.msra.mxu0 0.0
        %503 = vmatprep.subr.mxu0 0.0
        %504 = vmatpush1.msra.mxu0 0.0
        %505 = vmatprep.subr.mxu0 0.0
        %506 = vmatpush1.msra.mxu0 0.0
        %507 = vmatprep.subr.mxu0 0.0
        %508 = vmatpush1.msra.mxu0 0.0
        %509 = vmatprep.subr.mxu0 0.0
        %510 = vmatpush1.msra.mxu0 0.0
        %511 = vmatprep.subr.mxu0 0.0
        %512 = vmatpush1.msra.mxu0 0.0
        %513 = vmatprep.subr.mxu0 0.0
        %514 = vmatpush1.msra.mxu0 0.0
        %515 = vmatprep.subr.mxu0 0.0
        %516 = vmatpush1.msra.mxu0 0.0
        %517 = vmatprep.subr.mxu0 0.0
        %518 = vmatpush1.msra.mxu0 0.0
        %519 = vmatprep.subr.mxu0 0.0
        %520 = vmatpush1.msra.mxu0 0.0
        %521 = vmatprep.subr.mxu0 0.0
        %522 = vmatpush1.msra.mxu0 %v485
        %523 = vmatprep.subr.mxu0 0.0
        %524 = vmatpush1.msra.mxu0 %v484
        %525 = vmatprep.subr.mxu0 0.0
        %526 = vmatpush1.msra.mxu0 %v483
        %527 = vmatprep.subr.mxu0 0.0
        %528 = vmatpush1.msra.mxu0 %v482
        %529 = vmatprep.subr.mxu0 0.0
        %530 = vmatpush2.msra.mxu0 0.0
        %531 = vmatprep.subr.mxu0 0.0
        %532 = vmatpush2.msra.mxu0 0.0
        %533 = vmatprep.subr.mxu0 0.0
        %534 = vmatpush2.msra.mxu0 0.0
        %535 = vmatprep.subr.mxu0 0.0
        %536 = vmatpush2.msra.mxu0 0.0
        %537 = vmatprep.subr.mxu0 0.0
        %538 = vmatpush2.msra.mxu0 0.0
        %539 = vmatprep.subr.mxu0 0.0
        %540 = vmatpush2.msra.mxu0 0.0
        %541 = vmatprep.subr.mxu0 0.0
        %542 = vmatpush2.msra.mxu0 0.0
        %543 = vmatprep.subr.mxu0 0.0
        %544 = vmatpush2.msra.mxu0 0.0
        %545 = vmatprep.subr.mxu0 0.0
        %546 = vmatpush2.msra.mxu0 0.0
        %547 = vmatprep.subr.mxu0 0.0
        %548 = vmatpush2.msra.mxu0 0.0
        %549 = vmatprep.subr.mxu0 0.0
        %550 = vmatpush2.msra.mxu0 0.0
        %551 = vmatprep.subr.mxu0 0.0
        %552 = vmatpush2.msra.mxu0 0.0
        %553 = vmatprep.subr.mxu0 0.0
        %554 = vmatpush2.msra.mxu0 0.0
        %555 = vmatprep.subr.mxu0 0.0
        %556 = vmatpush2.msra.mxu0 0.0
        %557 = vmatprep.subr.mxu0 0.0
        %558 = vmatpush2.msra.mxu0 0.0
        %559 = vmatprep.subr.mxu0 0.0
        %560 = vmatpush2.msra.mxu0 0.0
        %561 = vmatprep.mubr.f32.mxu0 0.0
        %562 = vmatmul.mubr.f32.gmra.mxu0 %v495
        %v563 = vpop.f32.mrf.mxu0
        %v564 = vadd.f32 %v492, %v563
        %v565 = vpop.f32.mrf.mxu0
        %566 = vdwg.mxu0
        %v567 = vld [vmem:[%s345] sm:$0xff]
        %s568 = scalar_lea.vmem [#allocation9], 64
        %v569 = vld [vmem:[%s568] sm:$0xff]
        %v570 = vld [vmem:[%s568 + $0x8] sm:$0xff]
        %v571 = vld [vmem:[%s568 + $0x10] sm:$0xff]
        %v572 = vld [vmem:[%s568 + $0x18] sm:$0xff]
        %s573 = scalar_lea.vmem %s4, 2
        %v574 = vld [vmem:[%s573] sm:$0x1]
        %v576 = vlaneseq
        %v577 = vshrl.u32 %v576, 7
        %v578 = vsub.s32 0, %v577
        %v579 = vrot.slane %v574, %v578
        %v582 = vsel %vm406, %v567, 0
        %584 = vmatprep.subr.mxu0 0.0
        %585 = vmatpush1.msra.mxu0 0.0
        %586 = vmatprep.subr.mxu0 0.0
        %587 = vmatpush1.msra.mxu0 0.0
        %588 = vmatprep.subr.mxu0 0.0
        %589 = vmatpush1.msra.mxu0 0.0
        %590 = vmatprep.subr.mxu0 0.0
        %591 = vmatpush1.msra.mxu0 0.0
        %592 = vmatprep.subr.mxu0 0.0
        %593 = vmatpush1.msra.mxu0 0.0
        %594 = vmatprep.subr.mxu0 0.0
        %595 = vmatpush1.msra.mxu0 0.0
        %596 = vmatprep.subr.mxu0 0.0
        %597 = vmatpush1.msra.mxu0 0.0
        %598 = vmatprep.subr.mxu0 0.0
        %599 = vmatpush1.msra.mxu0 0.0
        %600 = vmatprep.subr.mxu0 0.0
        %601 = vmatpush1.msra.mxu0 0.0
        %602 = vmatprep.subr.mxu0 0.0
        %603 = vmatpush1.msra.mxu0 0.0
        %604 = vmatprep.subr.mxu0 0.0
        %605 = vmatpush1.msra.mxu0 0.0
        %606 = vmatprep.subr.mxu0 0.0
        %607 = vmatpush1.msra.mxu0 0.0
        %608 = vmatprep.subr.mxu0 0.0
        %609 = vmatpush1.msra.mxu0 %v572
        %610 = vmatprep.subr.mxu0 0.0
        %611 = vmatpush1.msra.mxu0 %v571
        %612 = vmatprep.subr.mxu0 0.0
        %613 = vmatpush1.msra.mxu0 %v570
        %614 = vmatprep.subr.mxu0 0.0
        %615 = vmatpush1.msra.mxu0 %v569
        %616 = vmatprep.subr.mxu0 0.0
        %617 = vmatpush2.msra.mxu0 0.0
        %618 = vmatprep.subr.mxu0 0.0
        %619 = vmatpush2.msra.mxu0 0.0
        %620 = vmatprep.subr.mxu0 0.0
        %621 = vmatpush2.msra.mxu0 0.0
        %622 = vmatprep.subr.mxu0 0.0
        %623 = vmatpush2.msra.mxu0 0.0
        %624 = vmatprep.subr.mxu0 0.0
        %625 = vmatpush2.msra.mxu0 0.0
        %626 = vmatprep.subr.mxu0 0.0
        %627 = vmatpush2.msra.mxu0 0.0
        %628 = vmatprep.subr.mxu0 0.0
        %629 = vmatpush2.msra.mxu0 0.0
        %630 = vmatprep.subr.mxu0 0.0
        %631 = vmatpush2.msra.mxu0 0.0
        %632 = vmatprep.subr.mxu0 0.0
        %633 = vmatpush2.msra.mxu0 0.0
        %634 = vmatprep.subr.mxu0 0.0
        %635 = vmatpush2.msra.mxu0 0.0
        %636 = vmatprep.subr.mxu0 0.0
        %637 = vmatpush2.msra.mxu0 0.0
        %638 = vmatprep.subr.mxu0 0.0
        %639 = vmatpush2.msra.mxu0 0.0
        %640 = vmatprep.subr.mxu0 0.0
        %641 = vmatpush2.msra.mxu0 0.0
        %642 = vmatprep.subr.mxu0 0.0
        %643 = vmatpush2.msra.mxu0 0.0
        %644 = vmatprep.subr.mxu0 0.0
        %645 = vmatpush2.msra.mxu0 0.0
        %646 = vmatprep.subr.mxu0 0.0
        %647 = vmatpush2.msra.mxu0 0.0
        %648 = vmatprep.mubr.f32.mxu0 0.0
        %649 = vmatmul.mubr.f32.gmra.mxu0 %v582
        %v650 = vpop.f32.mrf.mxu0
        %v651 = vadd.f32 %v579, %v650
        %v652 = vpop.f32.mrf.mxu0
        %653 = vdwg.mxu0
        %vm654 = vcmask 64512
        %v656 = vsel %vm654, %v477, 0
        %v659 = vsel %vm654, %v564, 0
        %661 = vmatprep.subr.mxu0 0.0
        %662 = vmatpush1.xpose.msra.mxu0 0.0
        %663 = vmatprep.subr.mxu0 0.0
        %664 = vmatpush1.xpose.msra.mxu0 0.0
        %665 = vmatprep.subr.mxu0 0.0
        %666 = vmatpush1.xpose.msra.mxu0 0.0
        %667 = vmatprep.subr.mxu0 0.0
        %668 = vmatpush1.xpose.msra.mxu0 0.0
        %669 = vmatprep.subr.mxu0 0.0
        %670 = vmatpush1.xpose.msra.mxu0 0.0
        %671 = vmatprep.subr.mxu0 0.0
        %672 = vmatpush1.xpose.msra.mxu0 0.0
        %673 = vmatprep.subr.mxu0 0.0
        %674 = vmatpush1.xpose.msra.mxu0 0.0
        %675 = vmatprep.subr.mxu0 0.0
        %676 = vmatpush1.xpose.msra.mxu0 0.0
        %677 = vmatprep.subr.mxu0 0.0
        %678 = vmatpush1.xpose.msra.mxu0 0.0
        %679 = vmatprep.subr.mxu0 0.0
        %680 = vmatpush1.xpose.msra.mxu0 0.0
        %681 = vmatprep.subr.mxu0 0.0
        %682 = vmatpush1.xpose.msra.mxu0 0.0
        %683 = vmatprep.subr.mxu0 0.0
        %684 = vmatpush1.xpose.msra.mxu0 0.0
        %685 = vmatprep.subr.mxu0 0.0
        %686 = vmatpush1.xpose.msra.mxu0 0.0
        %687 = vmatprep.subr.mxu0 0.0
        %688 = vmatpush1.xpose.msra.mxu0 0.0
        %689 = vmatprep.subr.mxu0 0.0
        %690 = vmatpush1.xpose.msra.mxu0 0.0
        %691 = vmatprep.subr.mxu0 0.0
        %692 = vmatpush1.xpose.msra.mxu0 %v659
        %693 = vmatprep.subr.mxu0 0.0
        %694 = vmatpush2.xpose.msra.mxu0 0.0
        %695 = vmatprep.subr.mxu0 0.0
        %696 = vmatpush2.xpose.msra.mxu0 0.0
        %697 = vmatprep.subr.mxu0 0.0
        %698 = vmatpush2.xpose.msra.mxu0 0.0
        %699 = vmatprep.subr.mxu0 0.0
        %700 = vmatpush2.xpose.msra.mxu0 0.0
        %701 = vmatprep.subr.mxu0 0.0
        %702 = vmatpush2.xpose.msra.mxu0 0.0
        %703 = vmatprep.subr.mxu0 0.0
        %704 = vmatpush2.xpose.msra.mxu0 0.0
        %705 = vmatprep.subr.mxu0 0.0
        %706 = vmatpush2.xpose.msra.mxu0 0.0
        %707 = vmatprep.subr.mxu0 0.0
        %708 = vmatpush2.xpose.msra.mxu0 0.0
        %709 = vmatprep.subr.mxu0 0.0
        %710 = vmatpush2.xpose.msra.mxu0 0.0
        %711 = vmatprep.subr.mxu0 0.0
        %712 = vmatpush2.xpose.msra.mxu0 0.0
        %713 = vmatprep.subr.mxu0 0.0
        %714 = vmatpush2.xpose.msra.mxu0 0.0
        %715 = vmatprep.subr.mxu0 0.0
        %716 = vmatpush2.xpose.msra.mxu0 0.0
        %717 = vmatprep.subr.mxu0 0.0
        %718 = vmatpush2.xpose.msra.mxu0 0.0
        %719 = vmatprep.subr.mxu0 0.0
        %720 = vmatpush2.xpose.msra.mxu0 0.0
        %721 = vmatprep.subr.mxu0 0.0
        %722 = vmatpush2.xpose.msra.mxu0 0.0
        %723 = vmatprep.subr.mxu0 0.0
        %724 = vmatpush2.xpose.msra.mxu0 0.0
        %725 = vmatprep.mubr.f32.mxu0 0.0
        %726 = vmatmul.mubr.f32.gmra.mxu0 %v656
        %v727 = vpop.f32.mrf.mxu0
        %v728 = vadd.f32 0.0, %v727
        %v729 = vpop.f32.mrf.mxu0
        %730 = vdwg.mxu0
        %v731 = vsel %vm654, %v728, -inf
        %732 = vmax.xlane.f32.xlu0 %v731
        %v733 = vpop.xlane.xlu0 %732
        %v734 = vsub.f32 %v728, %v733
        %v735 = vmul.f32 %v734, 1.442695
        %v736 = vpow.pop %v735
        %v737 = vsel %vm654, %v736, 0.0
        %738 = vadd.xlane.f32.xlu0 %v737
        %v739 = vpop.xlane.xlu0 %738
        %v741 = vsel %vm654, %v736, 0
        %743 = vmatprep.subr.mxu0 0.0
        %744 = vmatpush1.msra.mxu0 0.0
        %745 = vmatprep.subr.mxu0 0.0
        %746 = vmatpush1.msra.mxu0 0.0
        %747 = vmatprep.subr.mxu0 0.0
        %748 = vmatpush1.msra.mxu0 0.0
        %749 = vmatprep.subr.mxu0 0.0
        %750 = vmatpush1.msra.mxu0 0.0
        %751 = vmatprep.subr.mxu0 0.0
        %752 = vmatpush1.msra.mxu0 0.0
        %753 = vmatprep.subr.mxu0 0.0
        %754 = vmatpush1.msra.mxu0 0.0
        %755 = vmatprep.subr.mxu0 0.0
        %756 = vmatpush1.msra.mxu0 0.0
        %757 = vmatprep.subr.mxu0 0.0
        %758 = vmatpush1.msra.mxu0 0.0
        %759 = vmatprep.subr.mxu0 0.0
        %760 = vmatpush1.msra.mxu0 0.0
        %761 = vmatprep.subr.mxu0 0.0
        %762 = vmatpush1.msra.mxu0 0.0
        %763 = vmatprep.subr.mxu0 0.0
        %764 = vmatpush1.msra.mxu0 0.0
        %765 = vmatprep.subr.mxu0 0.0
        %766 = vmatpush1.msra.mxu0 0.0
        %767 = vmatprep.subr.mxu0 0.0
        %768 = vmatpush1.msra.mxu0 0.0
        %769 = vmatprep.subr.mxu0 0.0
        %770 = vmatpush1.msra.mxu0 0.0
        %771 = vmatprep.subr.mxu0 0.0
        %772 = vmatpush1.msra.mxu0 0.0
        %773 = vmatprep.subr.mxu0 0.0
        %774 = vmatpush1.msra.mxu0 %v651
        %775 = vmatprep.subr.mxu0 0.0
        %776 = vmatpush2.msra.mxu0 0.0
        %777 = vmatprep.subr.mxu0 0.0
        %778 = vmatpush2.msra.mxu0 0.0
        %779 = vmatprep.subr.mxu0 0.0
        %780 = vmatpush2.msra.mxu0 0.0
        %781 = vmatprep.subr.mxu0 0.0
        %782 = vmatpush2.msra.mxu0 0.0
        %783 = vmatprep.subr.mxu0 0.0
        %784 = vmatpush2.msra.mxu0 0.0
        %785 = vmatprep.subr.mxu0 0.0
        %786 = vmatpush2.msra.mxu0 0.0
        %787 = vmatprep.subr.mxu0 0.0
        %788 = vmatpush2.msra.mxu0 0.0
        %789 = vmatprep.subr.mxu0 0.0
        %790 = vmatpush2.msra.mxu0 0.0
        %791 = vmatprep.subr.mxu0 0.0
        %792 = vmatpush2.msra.mxu0 0.0
        %793 = vmatprep.subr.mxu0 0.0
        %794 = vmatpush2.msra.mxu0 0.0
        %795 = vmatprep.subr.mxu0 0.0
        %796 = vmatpush2.msra.mxu0 0.0
        %797 = vmatprep.subr.mxu0 0.0
        %798 = vmatpush2.msra.mxu0 0.0
        %799 = vmatprep.subr.mxu0 0.0
        %800 = vmatpush2.msra.mxu0 0.0
        %801 = vmatprep.subr.mxu0 0.0
        %802 = vmatpush2.msra.mxu0 0.0
        %803 = vmatprep.subr.mxu0 0.0
        %804 = vmatpush2.msra.mxu0 0.0
        %805 = vmatprep.subr.mxu0 0.0
        %806 = vmatpush2.msra.mxu0 0.0
        %807 = vmatprep.mubr.f32.mxu0 0.0
        %808 = vmatmul.mubr.f32.gmra.mxu0 %v741
        %v809 = vpop.f32.mrf.mxu0
        %v810 = vadd.f32 0.0, %v809
        %v811 = vpop.f32.mrf.mxu0
        %812 = vdwg.mxu0
        %v813 = vrcp.pop %v739
        %v814 = vmul.f32 %v810, %v813
        %815 = vst.msk [vmem:[#allocation2] sm:$0xff] %vm654, %v814
        %816 = vrot.lane.b32.xlu0 %v477, 120
        %v817 = vpop.permute.xlu0 %816
        %818 = vrot.lane.b32.xlu0 %v564, 120
        %v819 = vpop.permute.xlu0 %818
        %v820 = vsel %vm654, %v817, 0
        %v822 = vsel %vm654, %v819, 0
        %824 = vmatprep.subr.mxu0 0.0
        %825 = vmatpush1.xpose.msra.mxu0 0.0
        %826 = vmatprep.subr.mxu0 0.0
        %827 = vmatpush1.xpose.msra.mxu0 0.0
        %828 = vmatprep.subr.mxu0 0.0
        %829 = vmatpush1.xpose.msra.mxu0 0.0
        %830 = vmatprep.subr.mxu0 0.0
        %831 = vmatpush1.xpose.msra.mxu0 0.0
        %832 = vmatprep.subr.mxu0 0.0
        %833 = vmatpush1.xpose.msra.mxu0 0.0
        %834 = vmatprep.subr.mxu0 0.0
        %835 = vmatpush1.xpose.msra.mxu0 0.0
        %836 = vmatprep.subr.mxu0 0.0
        %837 = vmatpush1.xpose.msra.mxu0 0.0
        %838 = vmatprep.subr.mxu0 0.0
        %839 = vmatpush1.xpose.msra.mxu0 0.0
        %840 = vmatprep.subr.mxu0 0.0
        %841 = vmatpush1.xpose.msra.mxu0 0.0
        %842 = vmatprep.subr.mxu0 0.0
        %843 = vmatpush1.xpose.msra.mxu0 0.0
        %844 = vmatprep.subr.mxu0 0.0
        %845 = vmatpush1.xpose.msra.mxu0 0.0
        %846 = vmatprep.subr.mxu0 0.0
        %847 = vmatpush1.xpose.msra.mxu0 0.0
        %848 = vmatprep.subr.mxu0 0.0
        %849 = vmatpush1.xpose.msra.mxu0 0.0
        %850 = vmatprep.subr.mxu0 0.0
        %851 = vmatpush1.xpose.msra.mxu0 0.0
        %852 = vmatprep.subr.mxu0 0.0
        %853 = vmatpush1.xpose.msra.mxu0 0.0
        %854 = vmatprep.subr.mxu0 0.0
        %855 = vmatpush1.xpose.msra.mxu0 %v822
        %856 = vmatprep.subr.mxu0 0.0
        %857 = vmatpush2.xpose.msra.mxu0 0.0
        %858 = vmatprep.subr.mxu0 0.0
        %859 = vmatpush2.xpose.msra.mxu0 0.0
        %860 = vmatprep.subr.mxu0 0.0
        %861 = vmatpush2.xpose.msra.mxu0 0.0
        %862 = vmatprep.subr.mxu0 0.0
        %863 = vmatpush2.xpose.msra.mxu0 0.0
        %864 = vmatprep.subr.mxu0 0.0
        %865 = vmatpush2.xpose.msra.mxu0 0.0
        %866 = vmatprep.subr.mxu0 0.0
        %867 = vmatpush2.xpose.msra.mxu0 0.0
        %868 = vmatprep.subr.mxu0 0.0
        %869 = vmatpush2.xpose.msra.mxu0 0.0
        %870 = vmatprep.subr.mxu0 0.0
        %871 = vmatpush2.xpose.msra.mxu0 0.0
        %872 = vmatprep.subr.mxu0 0.0
        %873 = vmatpush2.xpose.msra.mxu0 0.0
        %874 = vmatprep.subr.mxu0 0.0
        %875 = vmatpush2.xpose.msra.mxu0 0.0
        %876 = vmatprep.subr.mxu0 0.0
        %877 = vmatpush2.xpose.msra.mxu0 0.0
        %878 = vmatprep.subr.mxu0 0.0
        %879 = vmatpush2.xpose.msra.mxu0 0.0
        %880 = vmatprep.subr.mxu0 0.0
        %881 = vmatpush2.xpose.msra.mxu0 0.0
        %882 = vmatprep.subr.mxu0 0.0
        %883 = vmatpush2.xpose.msra.mxu0 0.0
        %884 = vmatprep.subr.mxu0 0.0
        %885 = vmatpush2.xpose.msra.mxu0 0.0
        %886 = vmatprep.subr.mxu0 0.0
        %887 = vmatpush2.xpose.msra.mxu0 0.0
        %888 = vmatprep.mubr.f32.mxu0 0.0
        %889 = vmatmul.mubr.f32.gmra.mxu0 %v820
        %v890 = vpop.f32.mrf.mxu0
        %v891 = vadd.f32 0.0, %v890
        %v892 = vpop.f32.mrf.mxu0
        %893 = vdwg.mxu0
        %v894 = vsel %vm654, %v891, -inf
        %895 = vmax.xlane.f32.xlu0 %v894
        %v896 = vpop.xlane.xlu0 %895
        %v897 = vsub.f32 %v891, %v896
        %v898 = vmul.f32 %v897, 1.442695
        %v899 = vpow.pop %v898
        %v900 = vsel %vm654, %v899, 0.0
        %901 = vadd.xlane.f32.xlu0 %v900
        %v902 = vpop.xlane.xlu0 %901
        %904 = vrot.lane.b32.xlu0 %v651, 120
        %v905 = vpop.permute.xlu0 %904
        %v908 = vsel %vm654, %v899, 0
        %910 = vmatprep.subr.mxu0 0.0
        %911 = vmatpush1.msra.mxu0 0.0
        %912 = vmatprep.subr.mxu0 0.0
        %913 = vmatpush1.msra.mxu0 0.0
        %914 = vmatprep.subr.mxu0 0.0
        %915 = vmatpush1.msra.mxu0 0.0
        %916 = vmatprep.subr.mxu0 0.0
        %917 = vmatpush1.msra.mxu0 0.0
        %918 = vmatprep.subr.mxu0 0.0
        %919 = vmatpush1.msra.mxu0 0.0
        %920 = vmatprep.subr.mxu0 0.0
        %921 = vmatpush1.msra.mxu0 0.0
        %922 = vmatprep.subr.mxu0 0.0
        %923 = vmatpush1.msra.mxu0 0.0
        %924 = vmatprep.subr.mxu0 0.0
        %925 = vmatpush1.msra.mxu0 0.0
        %926 = vmatprep.subr.mxu0 0.0
        %927 = vmatpush1.msra.mxu0 0.0
        %928 = vmatprep.subr.mxu0 0.0
        %929 = vmatpush1.msra.mxu0 0.0
        %930 = vmatprep.subr.mxu0 0.0
        %931 = vmatpush1.msra.mxu0 0.0
        %932 = vmatprep.subr.mxu0 0.0
        %933 = vmatpush1.msra.mxu0 0.0
        %934 = vmatprep.subr.mxu0 0.0
        %935 = vmatpush1.msra.mxu0 0.0
        %936 = vmatprep.subr.mxu0 0.0
        %937 = vmatpush1.msra.mxu0 0.0
        %938 = vmatprep.subr.mxu0 0.0
        %939 = vmatpush1.msra.mxu0 0.0
        %940 = vmatprep.subr.mxu0 0.0
        %941 = vmatpush1.msra.mxu0 %v905
        %942 = vmatprep.subr.mxu0 0.0
        %943 = vmatpush2.msra.mxu0 0.0
        %944 = vmatprep.subr.mxu0 0.0
        %945 = vmatpush2.msra.mxu0 0.0
        %946 = vmatprep.subr.mxu0 0.0
        %947 = vmatpush2.msra.mxu0 0.0
        %948 = vmatprep.subr.mxu0 0.0
        %949 = vmatpush2.msra.mxu0 0.0
        %950 = vmatprep.subr.mxu0 0.0
        %951 = vmatpush2.msra.mxu0 0.0
        %952 = vmatprep.subr.mxu0 0.0
        %953 = vmatpush2.msra.mxu0 0.0
        %954 = vmatprep.subr.mxu0 0.0
        %955 = vmatpush2.msra.mxu0 0.0
        %956 = vmatprep.subr.mxu0 0.0
        %957 = vmatpush2.msra.mxu0 0.0
        %958 = vmatprep.subr.mxu0 0.0
        %959 = vmatpush2.msra.mxu0 0.0
        %960 = vmatprep.subr.mxu0 0.0
        %961 = vmatpush2.msra.mxu0 0.0
        %962 = vmatprep.subr.mxu0 0.0
        %963 = vmatpush2.msra.mxu0 0.0
        %964 = vmatprep.subr.mxu0 0.0
        %965 = vmatpush2.msra.mxu0 0.0
        %966 = vmatprep.subr.mxu0 0.0
        %967 = vmatpush2.msra.mxu0 0.0
        %968 = vmatprep.subr.mxu0 0.0
        %969 = vmatpush2.msra.mxu0 0.0
        %970 = vmatprep.subr.mxu0 0.0
        %971 = vmatpush2.msra.mxu0 0.0
        %972 = vmatprep.subr.mxu0 0.0
        %973 = vmatpush2.msra.mxu0 0.0
        %974 = vmatprep.mubr.f32.mxu0 0.0
        %975 = vmatmul.mubr.f32.gmra.mxu0 %v908
        %v976 = vpop.f32.mrf.mxu0
        %v977 = vadd.f32 0.0, %v976
        %v978 = vpop.f32.mrf.mxu0
        %979 = vdwg.mxu0
        %v980 = vrcp.pop %v902
        %v981 = vmul.f32 %v977, %v980
        %983 = vrot.lane.b32.xlu0 %v981, 8
        %v984 = vpop.permute.xlu0 %983
        %vm986 = vcmask 130112
        %987 = vst.msk [vmem:[#allocation2] sm:$0xff] %vm986, %v984
        %988 = vrot.lane.b32.xlu0 %v477, 112
        %v989 = vpop.permute.xlu0 %988
        %990 = vrot.lane.b32.xlu0 %v564, 112
        %v991 = vpop.permute.xlu0 %990
        %v992 = vsel %vm654, %v989, 0
        %v994 = vsel %vm654, %v991, 0
        %996 = vmatprep.subr.mxu0 0.0
        %997 = vmatpush1.xpose.msra.mxu0 0.0
        %998 = vmatprep.subr.mxu0 0.0
        %999 = vmatpush1.xpose.msra.mxu0 0.0
        %1000 = vmatprep.subr.mxu0 0.0
        %1001 = vmatpush1.xpose.msra.mxu0 0.0
        %1002 = vmatprep.subr.mxu0 0.0
        %1003 = vmatpush1.xpose.msra.mxu0 0.0
        %1004 = vmatprep.subr.mxu0 0.0
        %1005 = vmatpush1.xpose.msra.mxu0 0.0
        %1006 = vmatprep.subr.mxu0 0.0
        %1007 = vmatpush1.xpose.msra.mxu0 0.0
        %1008 = vmatprep.subr.mxu0 0.0
        %1009 = vmatpush1.xpose.msra.mxu0 0.0
        %1010 = vmatprep.subr.mxu0 0.0
        %1011 = vmatpush1.xpose.msra.mxu0 0.0
        %1012 = vmatprep.subr.mxu0 0.0
        %1013 = vmatpush1.xpose.msra.mxu0 0.0
        %1014 = vmatprep.subr.mxu0 0.0
        %1015 = vmatpush1.xpose.msra.mxu0 0.0
        %1016 = vmatprep.subr.mxu0 0.0
        %1017 = vmatpush1.xpose.msra.mxu0 0.0
        %1018 = vmatprep.subr.mxu0 0.0
        %1019 = vmatpush1.xpose.msra.mxu0 0.0
        %1020 = vmatprep.subr.mxu0 0.0
        %1021 = vmatpush1.xpose.msra.mxu0 0.0
        %1022 = vmatprep.subr.mxu0 0.0
        %1023 = vmatpush1.xpose.msra.mxu0 0.0
        %1024 = vmatprep.subr.mxu0 0.0
        %1025 = vmatpush1.xpose.msra.mxu0 0.0
        %1026 = vmatprep.subr.mxu0 0.0
        %1027 = vmatpush1.xpose.msra.mxu0 %v994
        %1028 = vmatprep.subr.mxu0 0.0
        %1029 = vmatpush2.xpose.msra.mxu0 0.0
        %1030 = vmatprep.subr.mxu0 0.0
        %1031 = vmatpush2.xpose.msra.mxu0 0.0
        %1032 = vmatprep.subr.mxu0 0.0
        %1033 = vmatpush2.xpose.msra.mxu0 0.0
        %1034 = vmatprep.subr.mxu0 0.0
        %1035 = vmatpush2.xpose.msra.mxu0 0.0
        %1036 = vmatprep.subr.mxu0 0.0
        %1037 = vmatpush2.xpose.msra.mxu0 0.0
        %1038 = vmatprep.subr.mxu0 0.0
        %1039 = vmatpush2.xpose.msra.mxu0 0.0
        %1040 = vmatprep.subr.mxu0 0.0
        %1041 = vmatpush2.xpose.msra.mxu0 0.0
        %1042 = vmatprep.subr.mxu0 0.0
        %1043 = vmatpush2.xpose.msra.mxu0 0.0
        %1044 = vmatprep.subr.mxu0 0.0
        %1045 = vmatpush2.xpose.msra.mxu0 0.0
        %1046 = vmatprep.subr.mxu0 0.0
        %1047 = vmatpush2.xpose.msra.mxu0 0.0
        %1048 = vmatprep.subr.mxu0 0.0
        %1049 = vmatpush2.xpose.msra.mxu0 0.0
        %1050 = vmatprep.subr.mxu0 0.0
        %1051 = vmatpush2.xpose.msra.mxu0 0.0
        %1052 = vmatprep.subr.mxu0 0.0
        %1053 = vmatpush2.xpose.msra.mxu0 0.0
        %1054 = vmatprep.subr.mxu0 0.0
        %1055 = vmatpush2.xpose.msra.mxu0 0.0
        %1056 = vmatprep.subr.mxu0 0.0
        %1057 = vmatpush2.xpose.msra.mxu0 0.0
        %1058 = vmatprep.subr.mxu0 0.0
        %1059 = vmatpush2.xpose.msra.mxu0 0.0
        %1060 = vmatprep.mubr.f32.mxu0 0.0
        %1061 = vmatmul.mubr.f32.gmra.mxu0 %v992
        %v1062 = vpop.f32.mrf.mxu0
        %v1063 = vadd.f32 0.0, %v1062
        %v1064 = vpop.f32.mrf.mxu0
        %1065 = vdwg.mxu0
        %v1066 = vsel %vm654, %v1063, -inf
        %1067 = vmax.xlane.f32.xlu0 %v1066
        %v1068 = vpop.xlane.xlu0 %1067
        %v1069 = vsub.f32 %v1063, %v1068
        %v1070 = vmul.f32 %v1069, 1.442695
        %v1071 = vpow.pop %v1070
        %v1072 = vsel %vm654, %v1071, 0.0
        %1073 = vadd.xlane.f32.xlu0 %v1072
        %v1074 = vpop.xlane.xlu0 %1073
        %1075 = vrot.lane.b32.xlu0 %v651, 112
        %v1076 = vpop.permute.xlu0 %1075
        %v1079 = vsel %vm654, %v1071, 0
        %1081 = vmatprep.subr.mxu0 0.0
        %1082 = vmatpush1.msra.mxu0 0.0
        %1083 = vmatprep.subr.mxu0 0.0
        %1084 = vmatpush1.msra.mxu0 0.0
        %1085 = vmatprep.subr.mxu0 0.0
        %1086 = vmatpush1.msra.mxu0 0.0
        %1087 = vmatprep.subr.mxu0 0.0
        %1088 = vmatpush1.msra.mxu0 0.0
        %1089 = vmatprep.subr.mxu0 0.0
        %1090 = vmatpush1.msra.mxu0 0.0
        %1091 = vmatprep.subr.mxu0 0.0
        %1092 = vmatpush1.msra.mxu0 0.0
        %1093 = vmatprep.subr.mxu0 0.0
        %1094 = vmatpush1.msra.mxu0 0.0
        %1095 = vmatprep.subr.mxu0 0.0
        %1096 = vmatpush1.msra.mxu0 0.0
        %1097 = vmatprep.subr.mxu0 0.0
        %1098 = vmatpush1.msra.mxu0 0.0
        %1099 = vmatprep.subr.mxu0 0.0
        %1100 = vmatpush1.msra.mxu0 0.0
        %1101 = vmatprep.subr.mxu0 0.0
        %1102 = vmatpush1.msra.mxu0 0.0
        %1103 = vmatprep.subr.mxu0 0.0
        %1104 = vmatpush1.msra.mxu0 0.0
        %1105 = vmatprep.subr.mxu0 0.0
        %1106 = vmatpush1.msra.mxu0 0.0
        %1107 = vmatprep.subr.mxu0 0.0
        %1108 = vmatpush1.msra.mxu0 0.0
        %1109 = vmatprep.subr.mxu0 0.0
        %1110 = vmatpush1.msra.mxu0 0.0
        %1111 = vmatprep.subr.mxu0 0.0
        %1112 = vmatpush1.msra.mxu0 %v1076
        %1113 = vmatprep.subr.mxu0 0.0
        %1114 = vmatpush2.msra.mxu0 0.0
        %1115 = vmatprep.subr.mxu0 0.0
        %1116 = vmatpush2.msra.mxu0 0.0
        %1117 = vmatprep.subr.mxu0 0.0
        %1118 = vmatpush2.msra.mxu0 0.0
        %1119 = vmatprep.subr.mxu0 0.0
        %1120 = vmatpush2.msra.mxu0 0.0
        %1121 = vmatprep.subr.mxu0 0.0
        %1122 = vmatpush2.msra.mxu0 0.0
        %1123 = vmatprep.subr.mxu0 0.0
        %1124 = vmatpush2.msra.mxu0 0.0
        %1125 = vmatprep.subr.mxu0 0.0
        %1126 = vmatpush2.msra.mxu0 0.0
        %1127 = vmatprep.subr.mxu0 0.0
        %1128 = vmatpush2.msra.mxu0 0.0
        %1129 = vmatprep.subr.mxu0 0.0
        %1130 = vmatpush2.msra.mxu0 0.0
        %1131 = vmatprep.subr.mxu0 0.0
        %1132 = vmatpush2.msra.mxu0 0.0
        %1133 = vmatprep.subr.mxu0 0.0
        %1134 = vmatpush2.msra.mxu0 0.0
        %1135 = vmatprep.subr.mxu0 0.0
        %1136 = vmatpush2.msra.mxu0 0.0
        %1137 = vmatprep.subr.mxu0 0.0
        %1138 = vmatpush2.msra.mxu0 0.0
        %1139 = vmatprep.subr.mxu0 0.0
        %1140 = vmatpush2.msra.mxu0 0.0
        %1141 = vmatprep.subr.mxu0 0.0
        %1142 = vmatpush2.msra.mxu0 0.0
        %1143 = vmatprep.subr.mxu0 0.0
        %1144 = vmatpush2.msra.mxu0 0.0
        %1145 = vmatprep.mubr.f32.mxu0 0.0
        %1146 = vmatmul.mubr.f32.gmra.mxu0 %v1079
        %v1147 = vpop.f32.mrf.mxu0
        %v1148 = vadd.f32 0.0, %v1147
        %v1149 = vpop.f32.mrf.mxu0
        %1150 = vdwg.mxu0
        %v1151 = vrcp.pop %v1074
        %v1152 = vmul.f32 %v1148, %v1151
        %1154 = vrot.lane.b32.xlu0 %v1152, 16
        %v1155 = vpop.permute.xlu0 %1154
        %vm1157 = vcmask 195712
        %1158 = vst.msk [vmem:[#allocation2] sm:$0xff] %vm1157, %v1155
        %1159 = vrot.lane.b32.xlu0 %v477, 104
        %v1160 = vpop.permute.xlu0 %1159
        %1161 = vrot.lane.b32.xlu0 %v564, 104
        %v1162 = vpop.permute.xlu0 %1161
        %v1163 = vsel %vm654, %v1160, 0
        %v1165 = vsel %vm654, %v1162, 0
        %1167 = vmatprep.subr.mxu0 0.0
        %1168 = vmatpush1.xpose.msra.mxu0 0.0
        %1169 = vmatprep.subr.mxu0 0.0
        %1170 = vmatpush1.xpose.msra.mxu0 0.0
        %1171 = vmatprep.subr.mxu0 0.0
        %1172 = vmatpush1.xpose.msra.mxu0 0.0
        %1173 = vmatprep.subr.mxu0 0.0
        %1174 = vmatpush1.xpose.msra.mxu0 0.0
        %1175 = vmatprep.subr.mxu0 0.0
        %1176 = vmatpush1.xpose.msra.mxu0 0.0
        %1177 = vmatprep.subr.mxu0 0.0
        %1178 = vmatpush1.xpose.msra.mxu0 0.0
        %1179 = vmatprep.subr.mxu0 0.0
        %1180 = vmatpush1.xpose.msra.mxu0 0.0
        %1181 = vmatprep.subr.mxu0 0.0
        %1182 = vmatpush1.xpose.msra.mxu0 0.0
        %1183 = vmatprep.subr.mxu0 0.0
        %1184 = vmatpush1.xpose.msra.mxu0 0.0
        %1185 = vmatprep.subr.mxu0 0.0
        %1186 = vmatpush1.xpose.msra.mxu0 0.0
        %1187 = vmatprep.subr.mxu0 0.0
        %1188 = vmatpush1.xpose.msra.mxu0 0.0
        %1189 = vmatprep.subr.mxu0 0.0
        %1190 = vmatpush1.xpose.msra.mxu0 0.0
        %1191 = vmatprep.subr.mxu0 0.0
        %1192 = vmatpush1.xpose.msra.mxu0 0.0
        %1193 = vmatprep.subr.mxu0 0.0
        %1194 = vmatpush1.xpose.msra.mxu0 0.0
        %1195 = vmatprep.subr.mxu0 0.0
        %1196 = vmatpush1.xpose.msra.mxu0 0.0
        %1197 = vmatprep.subr.mxu0 0.0
        %1198 = vmatpush1.xpose.msra.mxu0 %v1165
        %1199 = vmatprep.subr.mxu0 0.0
        %1200 = vmatpush2.xpose.msra.mxu0 0.0
        %1201 = vmatprep.subr.mxu0 0.0
        %1202 = vmatpush2.xpose.msra.mxu0 0.0
        %1203 = vmatprep.subr.mxu0 0.0
        %1204 = vmatpush2.xpose.msra.mxu0 0.0
        %1205 = vmatprep.subr.mxu0 0.0
        %1206 = vmatpush2.xpose.msra.mxu0 0.0
        %1207 = vmatprep.subr.mxu0 0.0
        %1208 = vmatpush2.xpose.msra.mxu0 0.0
        %1209 = vmatprep.subr.mxu0 0.0
        %1210 = vmatpush2.xpose.msra.mxu0 0.0
        %1211 = vmatprep.subr.mxu0 0.0
        %1212 = vmatpush2.xpose.msra.mxu0 0.0
        %1213 = vmatprep.subr.mxu0 0.0
        %1214 = vmatpush2.xpose.msra.mxu0 0.0
        %1215 = vmatprep.subr.mxu0 0.0
        %1216 = vmatpush2.xpose.msra.mxu0 0.0
        %1217 = vmatprep.subr.mxu0 0.0
        %1218 = vmatpush2.xpose.msra.mxu0 0.0
        %1219 = vmatprep.subr.mxu0 0.0
        %1220 = vmatpush2.xpose.msra.mxu0 0.0
        %1221 = vmatprep.subr.mxu0 0.0
        %1222 = vmatpush2.xpose.msra.mxu0 0.0
        %1223 = vmatprep.subr.mxu0 0.0
        %1224 = vmatpush2.xpose.msra.mxu0 0.0
        %1225 = vmatprep.subr.mxu0 0.0
        %1226 = vmatpush2.xpose.msra.mxu0 0.0
        %1227 = vmatprep.subr.mxu0 0.0
        %1228 = vmatpush2.xpose.msra.mxu0 0.0
        %1229 = vmatprep.subr.mxu0 0.0
        %1230 = vmatpush2.xpose.msra.mxu0 0.0
        %1231 = vmatprep.mubr.f32.mxu0 0.0
        %1232 = vmatmul.mubr.f32.gmra.mxu0 %v1163
        %v1233 = vpop.f32.mrf.mxu0
        %v1234 = vadd.f32 0.0, %v1233
        %v1235 = vpop.f32.mrf.mxu0
        %1236 = vdwg.mxu0
        %v1237 = vsel %vm654, %v1234, -inf
        %1238 = vmax.xlane.f32.xlu0 %v1237
        %v1239 = vpop.xlane.xlu0 %1238
        %v1240 = vsub.f32 %v1234, %v1239
        %v1241 = vmul.f32 %v1240, 1.442695
        %v1242 = vpow.pop %v1241
        %v1243 = vsel %vm654, %v1242, 0.0
        %1244 = vadd.xlane.f32.xlu0 %v1243
        %v1245 = vpop.xlane.xlu0 %1244
        %1246 = vrot.lane.b32.xlu0 %v651, 104
        %v1247 = vpop.permute.xlu0 %1246
        %v1250 = vsel %vm654, %v1242, 0
        %1252 = vmatprep.subr.mxu0 0.0
        %1253 = vmatpush1.msra.mxu0 0.0
        %1254 = vmatprep.subr.mxu0 0.0
        %1255 = vmatpush1.msra.mxu0 0.0
        %1256 = vmatprep.subr.mxu0 0.0
        %1257 = vmatpush1.msra.mxu0 0.0
        %1258 = vmatprep.subr.mxu0 0.0
        %1259 = vmatpush1.msra.mxu0 0.0
        %1260 = vmatprep.subr.mxu0 0.0
        %1261 = vmatpush1.msra.mxu0 0.0
        %1262 = vmatprep.subr.mxu0 0.0
        %1263 = vmatpush1.msra.mxu0 0.0
        %1264 = vmatprep.subr.mxu0 0.0
        %1265 = vmatpush1.msra.mxu0 0.0
        %1266 = vmatprep.subr.mxu0 0.0
        %1267 = vmatpush1.msra.mxu0 0.0
        %1268 = vmatprep.subr.mxu0 0.0
        %1269 = vmatpush1.msra.mxu0 0.0
        %1270 = vmatprep.subr.mxu0 0.0
        %1271 = vmatpush1.msra.mxu0 0.0
        %1272 = vmatprep.subr.mxu0 0.0
        %1273 = vmatpush1.msra.mxu0 0.0
        %1274 = vmatprep.subr.mxu0 0.0
        %1275 = vmatpush1.msra.mxu0 0.0
        %1276 = vmatprep.subr.mxu0 0.0
        %1277 = vmatpush1.msra.mxu0 0.0
        %1278 = vmatprep.subr.mxu0 0.0
        %1279 = vmatpush1.msra.mxu0 0.0
        %1280 = vmatprep.subr.mxu0 0.0
        %1281 = vmatpush1.msra.mxu0 0.0
        %1282 = vmatprep.subr.mxu0 0.0
        %1283 = vmatpush1.msra.mxu0 %v1247
        %1284 = vmatprep.subr.mxu0 0.0
        %1285 = vmatpush2.msra.mxu0 0.0
        %1286 = vmatprep.subr.mxu0 0.0
        %1287 = vmatpush2.msra.mxu0 0.0
        %1288 = vmatprep.subr.mxu0 0.0
        %1289 = vmatpush2.msra.mxu0 0.0
        %1290 = vmatprep.subr.mxu0 0.0
        %1291 = vmatpush2.msra.mxu0 0.0
        %1292 = vmatprep.subr.mxu0 0.0
        %1293 = vmatpush2.msra.mxu0 0.0
        %1294 = vmatprep.subr.mxu0 0.0
        %1295 = vmatpush2.msra.mxu0 0.0
        %1296 = vmatprep.subr.mxu0 0.0
        %1297 = vmatpush2.msra.mxu0 0.0
        %1298 = vmatprep.subr.mxu0 0.0
        %1299 = vmatpush2.msra.mxu0 0.0
        %1300 = vmatprep.subr.mxu0 0.0
        %1301 = vmatpush2.msra.mxu0 0.0
        %1302 = vmatprep.subr.mxu0 0.0
        %1303 = vmatpush2.msra.mxu0 0.0
        %1304 = vmatprep.subr.mxu0 0.0
        %1305 = vmatpush2.msra.mxu0 0.0
        %1306 = vmatprep.subr.mxu0 0.0
        %1307 = vmatpush2.msra.mxu0 0.0
        %1308 = vmatprep.subr.mxu0 0.0
        %1309 = vmatpush2.msra.mxu0 0.0
        %1310 = vmatprep.subr.mxu0 0.0
        %1311 = vmatpush2.msra.mxu0 0.0
        %1312 = vmatprep.subr.mxu0 0.0
        %1313 = vmatpush2.msra.mxu0 0.0
        %1314 = vmatprep.subr.mxu0 0.0
        %1315 = vmatpush2.msra.mxu0 0.0
        %1316 = vmatprep.mubr.f32.mxu0 0.0
        %1317 = vmatmul.mubr.f32.gmra.mxu0 %v1250
        %v1318 = vpop.f32.mrf.mxu0
        %v1319 = vadd.f32 0.0, %v1318
        %v1320 = vpop.f32.mrf.mxu0
        %1321 = vdwg.mxu0
        %v1322 = vrcp.pop %v1245
        %v1323 = vmul.f32 %v1319, %v1322
        %1325 = vrot.lane.b32.xlu0 %v1323, 24
        %v1326 = vpop.permute.xlu0 %1325
        %vm1328 = vcmask 261312
        %1329 = vst.msk [vmem:[#allocation2] sm:$0xff] %vm1328, %v1326
        %v1330 = vld [vmem:[#allocation2] sm:$0xff]
        %v1331 = vld [vmem:[#allocation11] sm:$0xff]
        %v1332 = vld [vmem:[#allocation11 + $0x8] sm:$0xff]
        %v1333 = vld [vmem:[#allocation11 + $0x10] sm:$0xff]
        %v1334 = vld [vmem:[#allocation11 + $0x18] sm:$0xff]
        %v1335 = vld [vmem:[%s6] sm:$0x1]
        %v1337 = vlaneseq
        %v1338 = vshrl.u32 %v1337, 7
        %v1339 = vsub.s32 0, %v1338
        %v1340 = vrot.slane %v1335, %v1339
        %v1343 = vsel %vm406, %v1330, 0
        %1345 = vmatprep.subr.mxu0 0.0
        %1346 = vmatpush1.msra.mxu0 0.0
        %1347 = vmatprep.subr.mxu0 0.0
        %1348 = vmatpush1.msra.mxu0 0.0
        %1349 = vmatprep.subr.mxu0 0.0
        %1350 = vmatpush1.msra.mxu0 0.0
        %1351 = vmatprep.subr.mxu0 0.0
        %1352 = vmatpush1.msra.mxu0 0.0
        %1353 = vmatprep.subr.mxu0 0.0
        %1354 = vmatpush1.msra.mxu0 0.0
        %1355 = vmatprep.subr.mxu0 0.0
        %1356 = vmatpush1.msra.mxu0 0.0
        %1357 = vmatprep.subr.mxu0 0.0
        %1358 = vmatpush1.msra.mxu0 0.0
        %1359 = vmatprep.subr.mxu0 0.0
        %1360 = vmatpush1.msra.mxu0 0.0
        %1361 = vmatprep.subr.mxu0 0.0
        %1362 = vmatpush1.msra.mxu0 0.0
        %1363 = vmatprep.subr.mxu0 0.0
        %1364 = vmatpush1.msra.mxu0 0.0
        %1365 = vmatprep.subr.mxu0 0.0
        %1366 = vmatpush1.msra.mxu0 0.0
        %1367 = vmatprep.subr.mxu0 0.0
        %1368 = vmatpush1.msra.mxu0 0.0
        %1369 = vmatprep.subr.mxu0 0.0
        %1370 = vmatpush1.msra.mxu0 %v1334
        %1371 = vmatprep.subr.mxu0 0.0
        %1372 = vmatpush1.msra.mxu0 %v1333
        %1373 = vmatprep.subr.mxu0 0.0
        %1374 = vmatpush1.msra.mxu0 %v1332
        %1375 = vmatprep.subr.mxu0 0.0
        %1376 = vmatpush1.msra.mxu0 %v1331
        %1377 = vmatprep.subr.mxu0 0.0
        %1378 = vmatpush2.msra.mxu0 0.0
        %1379 = vmatprep.subr.mxu0 0.0
        %1380 = vmatpush2.msra.mxu0 0.0
        %1381 = vmatprep.subr.mxu0 0.0
        %1382 = vmatpush2.msra.mxu0 0.0
        %1383 = vmatprep.subr.mxu0 0.0
        %1384 = vmatpush2.msra.mxu0 0.0
        %1385 = vmatprep.subr.mxu0 0.0
        %1386 = vmatpush2.msra.mxu0 0.0
        %1387 = vmatprep.subr.mxu0 0.0
        %1388 = vmatpush2.msra.mxu0 0.0
        %1389 = vmatprep.subr.mxu0 0.0
        %1390 = vmatpush2.msra.mxu0 0.0
        %1391 = vmatprep.subr.mxu0 0.0
        %1392 = vmatpush2.msra.mxu0 0.0
        %1393 = vmatprep.subr.mxu0 0.0
        %1394 = vmatpush2.msra.mxu0 0.0
        %1395 = vmatprep.subr.mxu0 0.0
        %1396 = vmatpush2.msra.mxu0 0.0
        %1397 = vmatprep.subr.mxu0 0.0
        %1398 = vmatpush2.msra.mxu0 0.0
        %1399 = vmatprep.subr.mxu0 0.0
        %1400 = vmatpush2.msra.mxu0 0.0
        %1401 = vmatprep.subr.mxu0 0.0
        %1402 = vmatpush2.msra.mxu0 0.0
        %1403 = vmatprep.subr.mxu0 0.0
        %1404 = vmatpush2.msra.mxu0 0.0
        %1405 = vmatprep.subr.mxu0 0.0
        %1406 = vmatpush2.msra.mxu0 0.0
        %1407 = vmatprep.subr.mxu0 0.0
        %1408 = vmatpush2.msra.mxu0 0.0
        %1409 = vmatprep.mubr.f32.mxu0 0.0
        %1410 = vmatmul.mubr.f32.gmra.mxu0 %v1343
        %v1411 = vpop.f32.mrf.mxu0
        %v1412 = vadd.f32 %v1340, %v1411
        %v1413 = vpop.f32.mrf.mxu0
        %1414 = vdwg.mxu0
        %1415 = vst.msk [vmem:[%s393] sm:$0xff] %vm406, %v1412
        %s1416 = sand.u32 %s198, 1
        %s1417 = scalar_lea.sflag [#allocation5], %s1416
        %s1418 = sand.u32 %s198, 1
        %s1419 = smul.addr %s1418, 8
        %s1420 = scalar_lea.vmem [#allocation12], %s1419
        // Predicated region
        $region69: #{tpu_custom_call.1} parent=47 // pred_check
          %p1421 = pneg %p208
        $region70: #{tpu_custom_call.1} parent=47 // pred_check_branch
          %1423 = sbr.rel (%p1421) target = $region72
        $region71: #{tpu_custom_call.1} parent=47 // pred_region
          %s1425 = ssub.s32 128, 128
          %1426 = vsyncadd %s1417, %s1425
          %s1427 = smul.addr %s28, 128
          %s1428 = scalar_lea.hbm %s7, %s1427
          %s1430 = sshll.u32 %s1420, 4
          %s1431 = int_to_ptr.vmem [resolvable:$true] %s1430
          %1433 = dma.vmem_to_hbm [thread:$0]  %s1431, 128, %s1428, %s1417
        $region72: #{tpu_custom_call.1} parent=47 // pred_fallthru
          _
      $region48: #{tpu_custom_call.1} parent=5 // pred_fallthru
        _
      %p1434 = scmp.le.s32.totalorder 2, %s23
      // Predicated region
      $region73: #{tpu_custom_call.1} parent=5 // pred_check
        %p1435 = pneg %p1434
      $region74: #{tpu_custom_call.1} parent=5 // pred_check_branch
        %1437 = sbr.rel (%p1435) target = $region76
      $region75: #{tpu_custom_call.1} parent=5 // pred_region
        %s1438 = ssub.s32 %s23, 2
        // Predicated region
        $region77: #{tpu_custom_call.1} parent=75 // pred_check
          %p1439 = pneg %p214
        $region78: #{tpu_custom_call.1} parent=75 // pred_check_branch
          %1441 = sbr.rel (%p1439) target = $region80
        $region79: #{tpu_custom_call.1} parent=75 // pred_region
          %s1442 = sand.u32 %s199, 1
          %s1443 = scalar_lea.sflag [#allocation5], %s1442
          %s1444 = sand.u32 %s199, 1
          %s1445 = smul.addr %s1444, 8
          %s1446 = scalar_lea.vmem [#allocation12], %s1445
          %1447 = dma.done %s1443, 128
        $region80: #{tpu_custom_call.1} parent=75 // pred_fallthru
          _
      $region76: #{tpu_custom_call.1} parent=5 // pred_fallthru
        _
    $region6: #{tpu_custom_call.1} parent=1 // loop_footer
      %s27 = sadd.s32 1, %s23
    $region7: #{tpu_custom_call.1} parent=1 // loop_footer_branch
      %22 = sbr.rel target = $region3
    $region8: #{tpu_custom_call.1} parent=1 // loop_exit
      _
    %1448 = vsyncpa [#allocation4], 1
    %s1449 = scalar_lea.sflag [#allocation4], 1
    %1450 = vsyncpa %s1449, 1
    %1451 = vsyncpa [#allocation7], 1
    %s1452 = scalar_lea.sflag [#allocation7], 1
    %1453 = vsyncpa %s1452, 1
    %1454 = vsyncpa [#allocation10], 1
    %1455 = vsyncpa [#allocation5], 1
    %s1456 = scalar_lea.sflag [#allocation5], 1
    %1457 = vsyncpa %s1456, 1

</llo_original>
